<compile_context>
chip_gen: v6e
topology: v6e:2x2x1
jax: 0.10.0
libtpu: 0.0.40
codegen_flags: <defaults>
</compile_context>

<pallas_src>
import functools

import jax
import jax.numpy as jnp
from jax import lax
from jax.experimental import pallas as pl
from jax.experimental.pallas import tpu as pltpu


# ----------------------------- kernel helpers ------------------------------

def _layernorm(x, w, b, eps=1e-5):
    mu = jnp.mean(x, axis=-1, keepdims=True)
    var = jnp.mean((x - mu) ** 2, axis=-1, keepdims=True)
    return (x - mu) * lax.rsqrt(var + eps) * w + b


def _bf16(x):
    return x.astype(jnp.bfloat16)


# ------------------------------ fused kernel --------------------------------

def fused_qvit_kernel(patches_ref, inw_ref, add_ref, vtw_ref, w1_ref, w2_ref,
                      pvec_ref, b1_ref, headw_ref, headv_ref, out_ref,
                      *, n_seq, n_batch):
    """One grid step = `n_batch` batch elements folded into the row dim."""
    L = vtw_ref.shape[0]           # static number of layers
    D = inw_ref.shape[1]           # embedding dim

    # --- patch embedding; add_ref folds input bias + cls token + pos emb ----
    # (cls rows of `patches` are zero, so the cls slot comes purely from add).
    patches = patches_ref[0]                                        # (BH*N, P)
    h = jnp.dot(patches, inw_ref[...],
                preferred_element_type=jnp.float32) + add_ref[...]  # (BH*N, D)

    # ---------------------- quantum attention blocks ------------------------
    for l in range(L):             # static unroll (L is small)
        pv = pvec_ref[l]           # (5, D): [ln1_w, ln1_b, ln2_w, ln2_b, b2]
        ln1w, ln1b = pv[0:1, :], pv[1:2, :]
        ln2w, ln2b = pv[2:3, :], pv[3:4, :]
        b2 = pv[4:5, :]
        b1 = b1_ref[l]             # (1, Hd)
        vtw = vtw_ref[l]           # (D, 2D) bf16 = [Vt | W]

        x = h
        hn = _layernorm(x, ln1w, ln1b)                              # (BH*N, D)

        # Per-batch part: sequence-axis normalization + (N, N) attention.
        t_parts = []
        for bi in range(n_batch):
            r0 = bi * n_seq
            hb = hn[r0:r0 + n_seq, :]                               # (N, D)

            # torch: inp / sqrt(sum(inp**2 + 1e-4, dim=seq, keepdim) + 1e-8),
            # done with a single rsqrt (one EUP push).
            inp = hb * lax.rsqrt(
                jnp.sum(hb * hb + 1e-4, axis=0, keepdims=True) + 1e-8)

            # TODO(synk): exact Qiskit SamplerQNN sampling (RBS vector-loader +
            # pyramid matmul circuits) is not expressible in Pallas; the
            # noiseless classical analogue is used.  The circuits return
            # probabilities (V x_i)_j^2 / (x_i^T W x_j)^2 and the torch code
            # then takes sqrt(prob + 1e-8), i.e. |V x_i| / |x_i^T W x_j|.
            inp_b = _bf16(inp)
            vw = jnp.dot(inp_b, vtw,
                         preferred_element_type=jnp.float32)        # (N, 2D)
            vx = jnp.abs(vw[:, :D])                                  # |V x_i|
            iw = vw[:, D:]                                           # x_i^T W
            # xwx[i, j] = (x_i^T W) . x_j -> contract dim 1 of both operands
            # (no explicit transpose, reuse the already-cast inp_b).
            xwx = jnp.abs(lax.dot_general(
                _bf16(iw), inp_b, (((1,), (1,)), ((), ())),
                preferred_element_type=jnp.float32))                 # (N, N)

            # softmax(dim=-1): exp on EUP + approx reciprocal of the row sum.
            m = jnp.max(xwx, axis=-1, keepdims=True)
            e = jnp.exp(xwx - m)
            attn = e * pl.reciprocal(jnp.sum(e, axis=-1, keepdims=True),
                                     approx=True)
            t_parts.append(jnp.dot(_bf16(attn), _bf16(vx),
                                   preferred_element_type=jnp.float32))
        t = t_parts[0] if n_batch == 1 else jnp.concatenate(t_parts, axis=0)

        x1 = x + t

        # MLP branch (folded over all BH*N rows).
        h2 = _layernorm(x1, ln2w, ln2b)
        z = jnp.dot(_bf16(h2), w1_ref[l],
                    preferred_element_type=jnp.float32) + b1
        # TODO(synk): torch nn.GELU() is exact-erf GELU; tanh approximation is
        # used here (erf lowering not guaranteed in Mosaic), |err| ~ 1e-3.
        z = jax.nn.gelu(z, approximate=True)
        z = jnp.dot(_bf16(z), w2_ref[l],
                    preferred_element_type=jnp.float32) + b2
        h = x1 + z

    # ---------------------- classification head -----------------------------
    rows = [h[bi * n_seq:bi * n_seq + 1, :] for bi in range(n_batch)]
    cls = rows[0] if n_batch == 1 else jnp.concatenate(rows, axis=0)  # (BH, D)
    hv = headv_ref[...]                                   # (3, 128) f32
    cls = _layernorm(cls, hv[0:1, :D], hv[1:2, :D])
    # Lane-dense store: (BH, 128); real classes live in the first C lanes.
    out_ref[0] = (jnp.dot(_bf16(cls), headw_ref[...],
                          preferred_element_type=jnp.float32) + hv[2:3, :])


# ------------------------------ JAX glue -----------------------------------

def img_to_patch(x, p):
    """U.img_to_patch: NCHW -> (B, T, C*p*p), flatten_channels=True."""
    B, C, H, W = x.shape
    x = x.reshape(B, C, H // p, p, W // p, p)
    x = x.transpose(0, 2, 4, 1, 3, 5)                    # B, H', W', C, p, p
    return x.reshape(B, (H // p) * (W // p), C * p * p)


def init_params(key, *, embed_dim, hidden_dim, num_channels, num_layers,
                num_classes, patch_size, num_patches):
    D, Hd, L = embed_dim, hidden_dim, num_layers
    P = num_channels * patch_size ** 2
    keys = iter(jax.random.split(key, 4 + 4 * num_layers))

    def nrm(shape, s=0.02):
        return s * jax.random.normal(next(keys), shape, jnp.float32)

    vtw, w1, b1, w2, b2 = [], [], [], [], []
    for _ in range(L):
        V, _ = jnp.linalg.qr(jax.random.normal(next(keys), (D, D), jnp.float32))
        W, _ = jnp.linalg.qr(jax.random.normal(next(keys), (D, D), jnp.float32))
        vtw.append(jnp.concatenate([V.T, W], axis=1))    # (D, 2D) = [Vt | W]
        w1.append(nrm((D, Hd)))
        b1.append(jnp.zeros((1, Hd), jnp.float32))
        w2.append(nrm((Hd, D)))
        b2.append(jnp.zeros((1, D), jnp.float32))

    return dict(
        in_w=nrm((P, D)),
        in_b=jnp.zeros((D,), jnp.float32),
        cls=jax.random.normal(next(keys), (1, 1, D), jnp.float32),
        pos=jax.random.normal(next(keys), (1, num_patches + 1, D), jnp.float32),
        ln1_w=jnp.ones((L, 1, D), jnp.float32),
        ln1_b=jnp.zeros((L, 1, D), jnp.float32),
        vtw=jnp.stack(vtw),                              # (L, D, 2D)
        ln2_w=jnp.ones((L, 1, D), jnp.float32),
        ln2_b=jnp.zeros((L, 1, D), jnp.float32),
        w1=jnp.stack(w1), b1=jnp.stack(b1),              # (L, D, H), (L, 1, H)
        w2=jnp.stack(w2), b2=jnp.stack(b2),              # (L, H, D), (L, 1, D)
        head_ln_w=jnp.ones((1, D), jnp.float32),
        head_ln_b=jnp.zeros((1, D), jnp.float32),
        head_w=nrm((D, num_classes)),
        head_b=jnp.zeros((1, num_classes), jnp.float32),
    )


def quantum_vit_forward(x, params, patch_size):
    B = x.shape[0]
    patches = img_to_patch(x, patch_size)                # (B, T, P)
    T, P = patches.shape[1], patches.shape[2]
    N = T + 1
    D = params["in_w"].shape[1]
    Hd = params["w1"].shape[2]
    C = params["head_w"].shape[1]
    L = params["ln1_w"].shape[0]

    # Fold the batch into matmul rows; keep a 2-way "parallel" grid when B is
    # even so both v7x TensorCores get half the batch each (harmless on
    # v5e/v6e, where it is a short serial loop).
    NG = 2 if (B % 2 == 0 and B >= 2) else 1
    BH = B // NG
    CP = 128 * ((C + 127) // 128)          # lane-dense padded class dim

    # Zero row 0 of each batch element -> the cls slot passes through the
    # patch-embed matmul untouched; its value comes from the additive term.
    patches_ext = jnp.concatenate(
        [jnp.zeros((B, 1, P), patches.dtype), patches], axis=1)     # (B, N, P)
    patches_fold = patches_ext.reshape(NG, BH * N, P).astype(jnp.bfloat16)

    # Additive term folding input bias, cls token and positional embedding,
    # tiled over the BH batch elements that share a grid step (param-only).
    add = jnp.concatenate(
        [params["cls"][0] + params["pos"][0, :1],
         params["in_b"][None, :] + params["pos"][0, 1:]], axis=0)   # (N, D)
    add_fold = jnp.tile(add, (BH, 1))                               # (BH*N, D)

    # Pre-cast MXU weights to bf16 once (accumulation stays f32 in-kernel).
    in_w = params["in_w"].astype(jnp.bfloat16)
    vtw = params["vtw"].astype(jnp.bfloat16)
    w1 = params["w1"].astype(jnp.bfloat16)
    w2 = params["w2"].astype(jnp.bfloat16)

    # Pack the tiny D-wide per-layer params into one operand: (L, 5, D).
    pvec = jnp.concatenate([params["ln1_w"], params["ln1_b"],
                            params["ln2_w"], params["ln2_b"],
                            params["b2"]], axis=1)
    b1 = params["b1"]                                               # (L, 1, Hd)

    # Lane-dense head: pad class dim to a multiple of 128 lanes; pack the head
    # LayerNorm weights and class bias into one (3, CP) array.
    head_w = jnp.zeros((D, CP), jnp.float32).at[:, :C].set(
        params["head_w"]).astype(jnp.bfloat16)
    head_small = jnp.zeros((3, CP), jnp.float32)
    head_small = head_small.at[0, :D].set(params["head_ln_w"][0])
    head_small = head_small.at[1, :D].set(params["head_ln_b"][0])
    head_small = head_small.at[2, :C].set(params["head_b"][0])

    operands = (patches_fold, in_w, add_fold, vtw, w1, w2,
                pvec, b1, head_w, head_small)

    # Advisory cost estimate for the XLA scheduler.
    flops = 2 * B * (N * P * D
                     + L * (2 * N * D * D + 2 * N * N * D + 2 * N * D * Hd)
                     + D * CP)
    transcendentals = B * (L * (N * N + N * Hd + 2 * N + D) + D)
    bytes_accessed = (sum(int(a.size) * a.dtype.itemsize for a in operands)
                      + NG * BH * CP * 4)

    def _full(shape):
        idx = (0,) * len(shape)
        return pl.BlockSpec(shape, lambda g, _i=idx: _i)

    kernel = functools.partial(fused_qvit_kernel, n_seq=N, n_batch=BH)

    # NOTE: total resident weights/activations are a few tens of KiB -- far
    # below even v7x's 64 MiB VMEM, so no vmem_limit / layer streaming needed.
    out = pl.pallas_call(
        kernel,
        out_shape=jax.ShapeDtypeStruct((NG, BH, CP), jnp.float32),
        grid=(NG,),
        in_specs=[
            pl.BlockSpec((1, BH * N, P), lambda g: (g, 0, 0)),
            _full(in_w.shape), _full(add_fold.shape),
            _full(vtw.shape), _full(w1.shape), _full(w2.shape),
            _full(pvec.shape), _full(b1.shape),
            _full(head_w.shape), _full(head_small.shape),
        ],
        out_specs=pl.BlockSpec((1, BH, CP), lambda g: (g, 0, 0)),
        compiler_params=pltpu.CompilerParams(
            dimension_semantics=("parallel",)),
        cost_estimate=pl.CostEstimate(flops=flops,
                                      transcendentals=transcendentals,
                                      bytes_accessed=bytes_accessed),
    )(*operands)
    return out.reshape(B, CP)[:, :C]


# --------------------------------- main -------------------------------------

if __name__ == "__main__":
    key = jax.random.PRNGKey(0)
    kx, kp = jax.random.split(key)

    B, Cch, Himg, Wimg = 2, 4, 16, 16
    patch = 4
    embed_dim, hidden_dim = 32, 64
    num_layers, num_classes = 2, 10
    T = (Himg // patch) * (Wimg // patch)                # 16 patches -> N = 17

    x = jax.random.normal(kx, (B, Cch, Himg, Wimg), jnp.float32)
    params = init_params(kp, embed_dim=embed_dim, hidden_dim=hidden_dim,
                         num_channels=Cch, num_layers=num_layers,
                         num_classes=num_classes, patch_size=patch,
                         num_patches=T)

    fwd = jax.jit(quantum_vit_forward, static_argnums=2)
    out = jax.block_until_ready(fwd(x, params, patch))
    assert out.shape == (B, num_classes)
    assert bool(jnp.all(jnp.isfinite(out)))
    print("KERNEL_OK")
</pallas_src>

<mosaic_0001>
module attributes {stable_mosaic.version = 11 : i64} {
  func.func @fused_qvit_kernel(%arg0: i32, %arg1: memref<1x17x64xbf16, #tpu.memory_space<vmem>>, %arg2: memref<64x32xbf16, #tpu.memory_space<vmem>>, %arg3: memref<17x32xf32, #tpu.memory_space<vmem>>, %arg4: memref<2x32x64xbf16, #tpu.memory_space<vmem>>, %arg5: memref<2x32x64xbf16, #tpu.memory_space<vmem>>, %arg6: memref<2x64x32xbf16, #tpu.memory_space<vmem>>, %arg7: memref<2x5x32xf32, #tpu.memory_space<vmem>>, %arg8: memref<2x1x64xf32, #tpu.memory_space<vmem>>, %arg9: memref<32x128xbf16, #tpu.memory_space<vmem>>, %arg10: memref<3x128xf32, #tpu.memory_space<vmem>>, %arg11: memref<1x1x128xf32, #tpu.memory_space<vmem>>) attributes {dimension_semantics = [#tpu.dimension_semantics<parallel>], iteration_bounds = array<i64: 2>, scalar_prefetch = 0 : i64, scratch_operands = 0 : i64, tpu.core_type = #tpu.core_type<tc>, window_params = [{transform_indices = @transform_0, window_bounds = array<i64: 1, 17, 64>}, {pipeline_mode = #tpu.pipeline_mode<synchronous>, transform_indices = @transform_1, window_bounds = array<i64: 64, 32>}, {pipeline_mode = #tpu.pipeline_mode<synchronous>, transform_indices = @transform_2, window_bounds = array<i64: 17, 32>}, {pipeline_mode = #tpu.pipeline_mode<synchronous>, transform_indices = @transform_3, window_bounds = array<i64: 2, 32, 64>}, {pipeline_mode = #tpu.pipeline_mode<synchronous>, transform_indices = @transform_4, window_bounds = array<i64: 2, 32, 64>}, {pipeline_mode = #tpu.pipeline_mode<synchronous>, transform_indices = @transform_5, window_bounds = array<i64: 2, 64, 32>}, {pipeline_mode = #tpu.pipeline_mode<synchronous>, transform_indices = @transform_6, window_bounds = array<i64: 2, 5, 32>}, {pipeline_mode = #tpu.pipeline_mode<synchronous>, transform_indices = @transform_7, window_bounds = array<i64: 2, 1, 64>}, {pipeline_mode = #tpu.pipeline_mode<synchronous>, transform_indices = @transform_8, window_bounds = array<i64: 32, 128>}, {pipeline_mode = #tpu.pipeline_mode<synchronous>, transform_indices = @transform_9, window_bounds = array<i64: 3, 128>}, {transform_indices = @transform_10, window_bounds = array<i64: 1, 1, 128>}]} {
    %c0 = arith.constant 0 : index
    %c0_0 = arith.constant 0 : index
    %c0_1 = arith.constant 0 : index
    %0 = vector.load %arg1[%c0, %c0_0, %c0_1] : memref<1x17x64xbf16, #tpu.memory_space<vmem>>, vector<1x17x64xbf16>
    %1 = vector.shape_cast %0 : vector<1x17x64xbf16> to vector<17x64xbf16>
    %c0_2 = arith.constant 0 : index
    %c0_3 = arith.constant 0 : index
    %2 = vector.load %arg2[%c0_2, %c0_3] : memref<64x32xbf16, #tpu.memory_space<vmem>>, vector<64x32xbf16>
    %cst = arith.constant dense<0.000000e+00> : vector<17x32xf32>
    %3 = tpu.matmul %1, %2, %cst {dimension_numbers = #tpu.dot_dimension_numbers<[1], [0], [0], [1], [0, 0, 1, 1], [], []>} : vector<17x64xbf16>, vector<64x32xbf16>, vector<17x32xf32> -> vector<17x32xf32>
    %c0_4 = arith.constant 0 : index
    %c0_5 = arith.constant 0 : index
    %4 = vector.load %arg3[%c0_4, %c0_5] : memref<17x32xf32, #tpu.memory_space<vmem>>, vector<17x32xf32>
    %5 = arith.addf %3, %4 : vector<17x32xf32>
    %c0_6 = arith.constant 0 : index
    %c0_7 = arith.constant 0 : index
    %c0_8 = arith.constant 0 : index
    %6 = vector.load %arg7[%c0_6, %c0_7, %c0_8] : memref<2x5x32xf32, #tpu.memory_space<vmem>>, vector<1x5x32xf32>
    %7 = vector.shape_cast %6 : vector<1x5x32xf32> to vector<5x32xf32>
    %8 = vector.extract_strided_slice %7 {offsets = [0, 0], sizes = [1, 32], strides = [1, 1]} : vector<5x32xf32> to vector<1x32xf32>
    %9 = vector.extract_strided_slice %7 {offsets = [1, 0], sizes = [1, 32], strides = [1, 1]} : vector<5x32xf32> to vector<1x32xf32>
    %10 = vector.extract_strided_slice %7 {offsets = [2, 0], sizes = [1, 32], strides = [1, 1]} : vector<5x32xf32> to vector<1x32xf32>
    %11 = vector.extract_strided_slice %7 {offsets = [3, 0], sizes = [1, 32], strides = [1, 1]} : vector<5x32xf32> to vector<1x32xf32>
    %12 = vector.extract_strided_slice %7 {offsets = [4, 0], sizes = [1, 32], strides = [1, 1]} : vector<5x32xf32> to vector<1x32xf32>
    %c0_9 = arith.constant 0 : index
    %c0_10 = arith.constant 0 : index
    %c0_11 = arith.constant 0 : index
    %13 = vector.load %arg8[%c0_9, %c0_10, %c0_11] : memref<2x1x64xf32, #tpu.memory_space<vmem>>, vector<1x1x64xf32>
    %14 = vector.shape_cast %13 : vector<1x1x64xf32> to vector<1x64xf32>
    %c0_12 = arith.constant 0 : index
    %c0_13 = arith.constant 0 : index
    %c0_14 = arith.constant 0 : index
    %15 = vector.load %arg4[%c0_12, %c0_13, %c0_14] : memref<2x32x64xbf16, #tpu.memory_space<vmem>>, vector<1x32x64xbf16>
    %16 = vector.shape_cast %15 : vector<1x32x64xbf16> to vector<32x64xbf16>
    %cst_15 = arith.constant dense<0.000000e+00> : vector<17xf32>
    %17 = vector.multi_reduction <add>, %5, %cst_15 [1] : vector<17x32xf32> to vector<17xf32>
    %18 = vector.shape_cast %17 : vector<17xf32> to vector<17x1xf32>
    %cst_16 = arith.constant 3.200000e+01 : f32
    %19 = vector.broadcast %cst_16 : f32 to vector<17x1xf32>
    %20 = arith.divf %18, %19 : vector<17x1xf32>
    %21 = vector.broadcast %20 : vector<17x1xf32> to vector<17x32xf32>
    %22 = arith.subf %5, %21 : vector<17x32xf32>
    %23 = arith.mulf %22, %22 : vector<17x32xf32>
    %cst_17 = arith.constant dense<0.000000e+00> : vector<17xf32>
    %24 = vector.multi_reduction <add>, %23, %cst_17 [1] : vector<17x32xf32> to vector<17xf32>
    %25 = vector.shape_cast %24 : vector<17xf32> to vector<17x1xf32>
    %cst_18 = arith.constant 3.200000e+01 : f32
    %26 = vector.broadcast %cst_18 : f32 to vector<17x1xf32>
    %27 = arith.divf %25, %26 : vector<17x1xf32>
    %28 = vector.broadcast %20 : vector<17x1xf32> to vector<17x32xf32>
    %29 = arith.subf %5, %28 : vector<17x32xf32>
    %cst_19 = arith.constant 9.99999974E-6 : f32
    %30 = vector.broadcast %cst_19 : f32 to vector<17x1xf32>
    %31 = arith.addf %27, %30 : vector<17x1xf32>
    %32 = math.rsqrt %31 : vector<17x1xf32>
    %33 = vector.broadcast %32 : vector<17x1xf32> to vector<17x32xf32>
    %34 = arith.mulf %29, %33 : vector<17x32xf32>
    %35 = vector.broadcast %8 : vector<1x32xf32> to vector<17x32xf32>
    %36 = arith.mulf %34, %35 : vector<17x32xf32>
    %37 = vector.broadcast %9 : vector<1x32xf32> to vector<17x32xf32>
    %38 = arith.addf %36, %37 : vector<17x32xf32>
    %39 = arith.mulf %38, %38 : vector<17x32xf32>
    %cst_20 = arith.constant 9.99999974E-5 : f32
    %40 = vector.broadcast %cst_20 : f32 to vector<17x32xf32>
    %41 = arith.addf %39, %40 : vector<17x32xf32>
    %cst_21 = arith.constant dense<0.000000e+00> : vector<32xf32>
    %42 = vector.multi_reduction <add>, %41, %cst_21 [0] : vector<17x32xf32> to vector<32xf32>
    %43 = vector.shape_cast %42 : vector<32xf32> to vector<1x32xf32>
    %cst_22 = arith.constant 9.99999993E-9 : f32
    %44 = vector.broadcast %cst_22 : f32 to vector<1x32xf32>
    %45 = arith.addf %43, %44 : vector<1x32xf32>
    %46 = math.rsqrt %45 : vector<1x32xf32>
    %47 = vector.broadcast %46 : vector<1x32xf32> to vector<17x32xf32>
    %48 = arith.mulf %38, %47 : vector<17x32xf32>
    %49 = arith.truncf %48 : vector<17x32xf32> to vector<17x32xbf16>
    %cst_23 = arith.constant dense<0.000000e+00> : vector<17x64xf32>
    %50 = tpu.matmul %49, %16, %cst_23 {dimension_numbers = #tpu.dot_dimension_numbers<[1], [0], [0], [1], [0, 0, 1, 1], [], []>} : vector<17x32xbf16>, vector<32x64xbf16>, vector<17x64xf32> -> vector<17x64xf32>
    %51 = vector.extract_strided_slice %50 {offsets = [0, 0], sizes = [17, 32], strides = [1, 1]} : vector<17x64xf32> to vector<17x32xf32>
    %52 = math.absf %51 : vector<17x32xf32>
    %53 = vector.extract_strided_slice %50 {offsets = [0, 32], sizes = [17, 32], strides = [1, 1]} : vector<17x64xf32> to vector<17x32xf32>
    %54 = arith.truncf %53 : vector<17x32xf32> to vector<17x32xbf16>
    %cst_24 = arith.constant dense<0.000000e+00> : vector<17x17xf32>
    %55 = tpu.matmul %54, %49, %cst_24 {dimension_numbers = #tpu.dot_dimension_numbers<[1], [1], [0], [0], [0, 0, 1, 0], [], []>} : vector<17x32xbf16>, vector<17x32xbf16>, vector<17x17xf32> -> vector<17x17xf32>
    %56 = math.absf %55 : vector<17x17xf32>
    %cst_25 = arith.constant dense<0xFF800000> : vector<17xf32>
    %57 = vector.multi_reduction <maximumf>, %56, %cst_25 [1] : vector<17x17xf32> to vector<17xf32>
    %58 = vector.shape_cast %57 : vector<17xf32> to vector<17x1xf32>
    %59 = vector.broadcast %58 : vector<17x1xf32> to vector<17x17xf32>
    %60 = arith.subf %56, %59 : vector<17x17xf32>
    %61 = math.exp %60 : vector<17x17xf32>
    %cst_26 = arith.constant dense<0.000000e+00> : vector<17xf32>
    %62 = vector.multi_reduction <add>, %61, %cst_26 [1] : vector<17x17xf32> to vector<17xf32>
    %63 = vector.shape_cast %62 : vector<17xf32> to vector<17x1xf32>
    %64 = tpu.reciprocal %63 {approx = true} : vector<17x1xf32> -> vector<17x1xf32>
    %65 = vector.broadcast %64 : vector<17x1xf32> to vector<17x17xf32>
    %66 = arith.mulf %61, %65 : vector<17x17xf32>
    %67 = arith.truncf %66 : vector<17x17xf32> to vector<17x17xbf16>
    %68 = arith.truncf %52 : vector<17x32xf32> to vector<17x32xbf16>
    %cst_27 = arith.constant dense<0.000000e+00> : vector<17x32xf32>
    %69 = tpu.matmul %67, %68, %cst_27 {dimension_numbers = #tpu.dot_dimension_numbers<[1], [0], [0], [1], [0, 0, 1, 1], [], []>} : vector<17x17xbf16>, vector<17x32xbf16>, vector<17x32xf32> -> vector<17x32xf32>
    %70 = arith.addf %5, %69 : vector<17x32xf32>
    %cst_28 = arith.constant dense<0.000000e+00> : vector<17xf32>
    %71 = vector.multi_reduction <add>, %70, %cst_28 [1] : vector<17x32xf32> to vector<17xf32>
    %72 = vector.shape_cast %71 : vector<17xf32> to vector<17x1xf32>
    %cst_29 = arith.constant 3.200000e+01 : f32
    %73 = vector.broadcast %cst_29 : f32 to vector<17x1xf32>
    %74 = arith.divf %72, %73 : vector<17x1xf32>
    %75 = vector.broadcast %74 : vector<17x1xf32> to vector<17x32xf32>
    %76 = arith.subf %70, %75 : vector<17x32xf32>
    %77 = arith.mulf %76, %76 : vector<17x32xf32>
    %cst_30 = arith.constant dense<0.000000e+00> : vector<17xf32>
    %78 = vector.multi_reduction <add>, %77, %cst_30 [1] : vector<17x32xf32> to vector<17xf32>
    %79 = vector.shape_cast %78 : vector<17xf32> to vector<17x1xf32>
    %cst_31 = arith.constant 3.200000e+01 : f32
    %80 = vector.broadcast %cst_31 : f32 to vector<17x1xf32>
    %81 = arith.divf %79, %80 : vector<17x1xf32>
    %82 = vector.broadcast %74 : vector<17x1xf32> to vector<17x32xf32>
    %83 = arith.subf %70, %82 : vector<17x32xf32>
    %cst_32 = arith.constant 9.99999974E-6 : f32
    %84 = vector.broadcast %cst_32 : f32 to vector<17x1xf32>
    %85 = arith.addf %81, %84 : vector<17x1xf32>
    %86 = math.rsqrt %85 : vector<17x1xf32>
    %87 = vector.broadcast %86 : vector<17x1xf32> to vector<17x32xf32>
    %88 = arith.mulf %83, %87 : vector<17x32xf32>
    %89 = vector.broadcast %10 : vector<1x32xf32> to vector<17x32xf32>
    %90 = arith.mulf %88, %89 : vector<17x32xf32>
    %91 = vector.broadcast %11 : vector<1x32xf32> to vector<17x32xf32>
    %92 = arith.addf %90, %91 : vector<17x32xf32>
    %93 = arith.truncf %92 : vector<17x32xf32> to vector<17x32xbf16>
    %c0_33 = arith.constant 0 : index
    %c0_34 = arith.constant 0 : index
    %c0_35 = arith.constant 0 : index
    %94 = vector.load %arg5[%c0_33, %c0_34, %c0_35] : memref<2x32x64xbf16, #tpu.memory_space<vmem>>, vector<1x32x64xbf16>
    %95 = vector.shape_cast %94 : vector<1x32x64xbf16> to vector<32x64xbf16>
    %cst_36 = arith.constant dense<0.000000e+00> : vector<17x64xf32>
    %96 = tpu.matmul %93, %95, %cst_36 {dimension_numbers = #tpu.dot_dimension_numbers<[1], [0], [0], [1], [0, 0, 1, 1], [], []>} : vector<17x32xbf16>, vector<32x64xbf16>, vector<17x64xf32> -> vector<17x64xf32>
    %97 = vector.broadcast %14 : vector<1x64xf32> to vector<17x64xf32>
    %98 = arith.addf %96, %97 : vector<17x64xf32>
    %99 = arith.mulf %98, %98 : vector<17x64xf32>
    %100 = arith.mulf %98, %99 : vector<17x64xf32>
    %cst_37 = arith.constant 4.471500e-02 : f32
    %101 = vector.broadcast %cst_37 : f32 to vector<17x64xf32>
    %102 = arith.mulf %101, %100 : vector<17x64xf32>
    %103 = arith.addf %98, %102 : vector<17x64xf32>
    %cst_38 = arith.constant 0.797884583 : f32
    %104 = vector.broadcast %cst_38 : f32 to vector<17x64xf32>
    %105 = arith.mulf %104, %103 : vector<17x64xf32>
    %106 = math.tanh %105 : vector<17x64xf32>
    %cst_39 = arith.constant 1.000000e+00 : f32
    %107 = vector.broadcast %cst_39 : f32 to vector<17x64xf32>
    %108 = arith.addf %107, %106 : vector<17x64xf32>
    %cst_40 = arith.constant 5.000000e-01 : f32
    %109 = vector.broadcast %cst_40 : f32 to vector<17x64xf32>
    %110 = arith.mulf %109, %108 : vector<17x64xf32>
    %111 = arith.mulf %98, %110 : vector<17x64xf32>
    %112 = arith.truncf %111 : vector<17x64xf32> to vector<17x64xbf16>
    %c0_41 = arith.constant 0 : index
    %c0_42 = arith.constant 0 : index
    %c0_43 = arith.constant 0 : index
    %113 = vector.load %arg6[%c0_41, %c0_42, %c0_43] : memref<2x64x32xbf16, #tpu.memory_space<vmem>>, vector<1x64x32xbf16>
    %114 = vector.shape_cast %113 : vector<1x64x32xbf16> to vector<64x32xbf16>
    %cst_44 = arith.constant dense<0.000000e+00> : vector<17x32xf32>
    %115 = tpu.matmul %112, %114, %cst_44 {dimension_numbers = #tpu.dot_dimension_numbers<[1], [0], [0], [1], [0, 0, 1, 1], [], []>} : vector<17x64xbf16>, vector<64x32xbf16>, vector<17x32xf32> -> vector<17x32xf32>
    %116 = vector.broadcast %12 : vector<1x32xf32> to vector<17x32xf32>
    %117 = arith.addf %115, %116 : vector<17x32xf32>
    %118 = arith.addf %70, %117 : vector<17x32xf32>
    %c1 = arith.constant 1 : index
    %c0_45 = arith.constant 0 : index
    %c0_46 = arith.constant 0 : index
    %119 = vector.load %arg7[%c1, %c0_45, %c0_46] : memref<2x5x32xf32, #tpu.memory_space<vmem>>, vector<1x5x32xf32>
    %120 = vector.shape_cast %119 : vector<1x5x32xf32> to vector<5x32xf32>
    %121 = vector.extract_strided_slice %120 {offsets = [0, 0], sizes = [1, 32], strides = [1, 1]} : vector<5x32xf32> to vector<1x32xf32>
    %122 = vector.extract_strided_slice %120 {offsets = [1, 0], sizes = [1, 32], strides = [1, 1]} : vector<5x32xf32> to vector<1x32xf32>
    %123 = vector.extract_strided_slice %120 {offsets = [2, 0], sizes = [1, 32], strides = [1, 1]} : vector<5x32xf32> to vector<1x32xf32>
    %124 = vector.extract_strided_slice %120 {offsets = [3, 0], sizes = [1, 32], strides = [1, 1]} : vector<5x32xf32> to vector<1x32xf32>
    %125 = vector.extract_strided_slice %120 {offsets = [4, 0], sizes = [1, 32], strides = [1, 1]} : vector<5x32xf32> to vector<1x32xf32>
    %c1_47 = arith.constant 1 : index
    %c0_48 = arith.constant 0 : index
    %c0_49 = arith.constant 0 : index
    %126 = vector.load %arg8[%c1_47, %c0_48, %c0_49] : memref<2x1x64xf32, #tpu.memory_space<vmem>>, vector<1x1x64xf32>
    %127 = vector.shape_cast %126 : vector<1x1x64xf32> to vector<1x64xf32>
    %c1_50 = arith.constant 1 : index
    %c0_51 = arith.constant 0 : index
    %c0_52 = arith.constant 0 : index
    %128 = vector.load %arg4[%c1_50, %c0_51, %c0_52] : memref<2x32x64xbf16, #tpu.memory_space<vmem>>, vector<1x32x64xbf16>
    %129 = vector.shape_cast %128 : vector<1x32x64xbf16> to vector<32x64xbf16>
    %cst_53 = arith.constant dense<0.000000e+00> : vector<17xf32>
    %130 = vector.multi_reduction <add>, %118, %cst_53 [1] : vector<17x32xf32> to vector<17xf32>
    %131 = vector.shape_cast %130 : vector<17xf32> to vector<17x1xf32>
    %cst_54 = arith.constant 3.200000e+01 : f32
    %132 = vector.broadcast %cst_54 : f32 to vector<17x1xf32>
    %133 = arith.divf %131, %132 : vector<17x1xf32>
    %134 = vector.broadcast %133 : vector<17x1xf32> to vector<17x32xf32>
    %135 = arith.subf %118, %134 : vector<17x32xf32>
    %136 = arith.mulf %135, %135 : vector<17x32xf32>
    %cst_55 = arith.constant dense<0.000000e+00> : vector<17xf32>
    %137 = vector.multi_reduction <add>, %136, %cst_55 [1] : vector<17x32xf32> to vector<17xf32>
    %138 = vector.shape_cast %137 : vector<17xf32> to vector<17x1xf32>
    %cst_56 = arith.constant 3.200000e+01 : f32
    %139 = vector.broadcast %cst_56 : f32 to vector<17x1xf32>
    %140 = arith.divf %138, %139 : vector<17x1xf32>
    %141 = vector.broadcast %133 : vector<17x1xf32> to vector<17x32xf32>
    %142 = arith.subf %118, %141 : vector<17x32xf32>
    %cst_57 = arith.constant 9.99999974E-6 : f32
    %143 = vector.broadcast %cst_57 : f32 to vector<17x1xf32>
    %144 = arith.addf %140, %143 : vector<17x1xf32>
    %145 = math.rsqrt %144 : vector<17x1xf32>
    %146 = vector.broadcast %145 : vector<17x1xf32> to vector<17x32xf32>
    %147 = arith.mulf %142, %146 : vector<17x32xf32>
    %148 = vector.broadcast %121 : vector<1x32xf32> to vector<17x32xf32>
    %149 = arith.mulf %147, %148 : vector<17x32xf32>
    %150 = vector.broadcast %122 : vector<1x32xf32> to vector<17x32xf32>
    %151 = arith.addf %149, %150 : vector<17x32xf32>
    %152 = arith.mulf %151, %151 : vector<17x32xf32>
    %cst_58 = arith.constant 9.99999974E-5 : f32
    %153 = vector.broadcast %cst_58 : f32 to vector<17x32xf32>
    %154 = arith.addf %152, %153 : vector<17x32xf32>
    %cst_59 = arith.constant dense<0.000000e+00> : vector<32xf32>
    %155 = vector.multi_reduction <add>, %154, %cst_59 [0] : vector<17x32xf32> to vector<32xf32>
    %156 = vector.shape_cast %155 : vector<32xf32> to vector<1x32xf32>
    %cst_60 = arith.constant 9.99999993E-9 : f32
    %157 = vector.broadcast %cst_60 : f32 to vector<1x32xf32>
    %158 = arith.addf %156, %157 : vector<1x32xf32>
    %159 = math.rsqrt %158 : vector<1x32xf32>
    %160 = vector.broadcast %159 : vector<1x32xf32> to vector<17x32xf32>
    %161 = arith.mulf %151, %160 : vector<17x32xf32>
    %162 = arith.truncf %161 : vector<17x32xf32> to vector<17x32xbf16>
    %cst_61 = arith.constant dense<0.000000e+00> : vector<17x64xf32>
    %163 = tpu.matmul %162, %129, %cst_61 {dimension_numbers = #tpu.dot_dimension_numbers<[1], [0], [0], [1], [0, 0, 1, 1], [], []>} : vector<17x32xbf16>, vector<32x64xbf16>, vector<17x64xf32> -> vector<17x64xf32>
    %164 = vector.extract_strided_slice %163 {offsets = [0, 0], sizes = [17, 32], strides = [1, 1]} : vector<17x64xf32> to vector<17x32xf32>
    %165 = math.absf %164 : vector<17x32xf32>
    %166 = vector.extract_strided_slice %163 {offsets = [0, 32], sizes = [17, 32], strides = [1, 1]} : vector<17x64xf32> to vector<17x32xf32>
    %167 = arith.truncf %166 : vector<17x32xf32> to vector<17x32xbf16>
    %cst_62 = arith.constant dense<0.000000e+00> : vector<17x17xf32>
    %168 = tpu.matmul %167, %162, %cst_62 {dimension_numbers = #tpu.dot_dimension_numbers<[1], [1], [0], [0], [0, 0, 1, 0], [], []>} : vector<17x32xbf16>, vector<17x32xbf16>, vector<17x17xf32> -> vector<17x17xf32>
    %169 = math.absf %168 : vector<17x17xf32>
    %cst_63 = arith.constant dense<0xFF800000> : vector<17xf32>
    %170 = vector.multi_reduction <maximumf>, %169, %cst_63 [1] : vector<17x17xf32> to vector<17xf32>
    %171 = vector.shape_cast %170 : vector<17xf32> to vector<17x1xf32>
    %172 = vector.broadcast %171 : vector<17x1xf32> to vector<17x17xf32>
    %173 = arith.subf %169, %172 : vector<17x17xf32>
    %174 = math.exp %173 : vector<17x17xf32>
    %cst_64 = arith.constant dense<0.000000e+00> : vector<17xf32>
    %175 = vector.multi_reduction <add>, %174, %cst_64 [1] : vector<17x17xf32> to vector<17xf32>
    %176 = vector.shape_cast %175 : vector<17xf32> to vector<17x1xf32>
    %177 = tpu.reciprocal %176 {approx = true} : vector<17x1xf32> -> vector<17x1xf32>
    %178 = vector.broadcast %177 : vector<17x1xf32> to vector<17x17xf32>
    %179 = arith.mulf %174, %178 : vector<17x17xf32>
    %180 = arith.truncf %179 : vector<17x17xf32> to vector<17x17xbf16>
    %181 = arith.truncf %165 : vector<17x32xf32> to vector<17x32xbf16>
    %cst_65 = arith.constant dense<0.000000e+00> : vector<17x32xf32>
    %182 = tpu.matmul %180, %181, %cst_65 {dimension_numbers = #tpu.dot_dimension_numbers<[1], [0], [0], [1], [0, 0, 1, 1], [], []>} : vector<17x17xbf16>, vector<17x32xbf16>, vector<17x32xf32> -> vector<17x32xf32>
    %183 = arith.addf %118, %182 : vector<17x32xf32>
    %cst_66 = arith.constant dense<0.000000e+00> : vector<17xf32>
    %184 = vector.multi_reduction <add>, %183, %cst_66 [1] : vector<17x32xf32> to vector<17xf32>
    %185 = vector.shape_cast %184 : vector<17xf32> to vector<17x1xf32>
    %cst_67 = arith.constant 3.200000e+01 : f32
    %186 = vector.broadcast %cst_67 : f32 to vector<17x1xf32>
    %187 = arith.divf %185, %186 : vector<17x1xf32>
    %188 = vector.broadcast %187 : vector<17x1xf32> to vector<17x32xf32>
    %189 = arith.subf %183, %188 : vector<17x32xf32>
    %190 = arith.mulf %189, %189 : vector<17x32xf32>
    %cst_68 = arith.constant dense<0.000000e+00> : vector<17xf32>
    %191 = vector.multi_reduction <add>, %190, %cst_68 [1] : vector<17x32xf32> to vector<17xf32>
    %192 = vector.shape_cast %191 : vector<17xf32> to vector<17x1xf32>
    %cst_69 = arith.constant 3.200000e+01 : f32
    %193 = vector.broadcast %cst_69 : f32 to vector<17x1xf32>
    %194 = arith.divf %192, %193 : vector<17x1xf32>
    %195 = vector.broadcast %187 : vector<17x1xf32> to vector<17x32xf32>
    %196 = arith.subf %183, %195 : vector<17x32xf32>
    %cst_70 = arith.constant 9.99999974E-6 : f32
    %197 = vector.broadcast %cst_70 : f32 to vector<17x1xf32>
    %198 = arith.addf %194, %197 : vector<17x1xf32>
    %199 = math.rsqrt %198 : vector<17x1xf32>
    %200 = vector.broadcast %199 : vector<17x1xf32> to vector<17x32xf32>
    %201 = arith.mulf %196, %200 : vector<17x32xf32>
    %202 = vector.broadcast %123 : vector<1x32xf32> to vector<17x32xf32>
    %203 = arith.mulf %201, %202 : vector<17x32xf32>
    %204 = vector.broadcast %124 : vector<1x32xf32> to vector<17x32xf32>
    %205 = arith.addf %203, %204 : vector<17x32xf32>
    %206 = arith.truncf %205 : vector<17x32xf32> to vector<17x32xbf16>
    %c1_71 = arith.constant 1 : index
    %c0_72 = arith.constant 0 : index
    %c0_73 = arith.constant 0 : index
    %207 = vector.load %arg5[%c1_71, %c0_72, %c0_73] : memref<2x32x64xbf16, #tpu.memory_space<vmem>>, vector<1x32x64xbf16>
    %208 = vector.shape_cast %207 : vector<1x32x64xbf16> to vector<32x64xbf16>
    %cst_74 = arith.constant dense<0.000000e+00> : vector<17x64xf32>
    %209 = tpu.matmul %206, %208, %cst_74 {dimension_numbers = #tpu.dot_dimension_numbers<[1], [0], [0], [1], [0, 0, 1, 1], [], []>} : vector<17x32xbf16>, vector<32x64xbf16>, vector<17x64xf32> -> vector<17x64xf32>
    %210 = vector.broadcast %127 : vector<1x64xf32> to vector<17x64xf32>
    %211 = arith.addf %209, %210 : vector<17x64xf32>
    %212 = arith.mulf %211, %211 : vector<17x64xf32>
    %213 = arith.mulf %211, %212 : vector<17x64xf32>
    %cst_75 = arith.constant 4.471500e-02 : f32
    %214 = vector.broadcast %cst_75 : f32 to vector<17x64xf32>
    %215 = arith.mulf %214, %213 : vector<17x64xf32>
    %216 = arith.addf %211, %215 : vector<17x64xf32>
    %cst_76 = arith.constant 0.797884583 : f32
    %217 = vector.broadcast %cst_76 : f32 to vector<17x64xf32>
    %218 = arith.mulf %217, %216 : vector<17x64xf32>
    %219 = math.tanh %218 : vector<17x64xf32>
    %cst_77 = arith.constant 1.000000e+00 : f32
    %220 = vector.broadcast %cst_77 : f32 to vector<17x64xf32>
    %221 = arith.addf %220, %219 : vector<17x64xf32>
    %cst_78 = arith.constant 5.000000e-01 : f32
    %222 = vector.broadcast %cst_78 : f32 to vector<17x64xf32>
    %223 = arith.mulf %222, %221 : vector<17x64xf32>
    %224 = arith.mulf %211, %223 : vector<17x64xf32>
    %225 = arith.truncf %224 : vector<17x64xf32> to vector<17x64xbf16>
    %c1_79 = arith.constant 1 : index
    %c0_80 = arith.constant 0 : index
    %c0_81 = arith.constant 0 : index
    %226 = vector.load %arg6[%c1_79, %c0_80, %c0_81] : memref<2x64x32xbf16, #tpu.memory_space<vmem>>, vector<1x64x32xbf16>
    %227 = vector.shape_cast %226 : vector<1x64x32xbf16> to vector<64x32xbf16>
    %cst_82 = arith.constant dense<0.000000e+00> : vector<17x32xf32>
    %228 = tpu.matmul %225, %227, %cst_82 {dimension_numbers = #tpu.dot_dimension_numbers<[1], [0], [0], [1], [0, 0, 1, 1], [], []>} : vector<17x64xbf16>, vector<64x32xbf16>, vector<17x32xf32> -> vector<17x32xf32>
    %229 = vector.broadcast %125 : vector<1x32xf32> to vector<17x32xf32>
    %230 = arith.addf %228, %229 : vector<17x32xf32>
    %231 = arith.addf %183, %230 : vector<17x32xf32>
    %232 = vector.extract_strided_slice %231 {offsets = [0, 0], sizes = [1, 32], strides = [1, 1]} : vector<17x32xf32> to vector<1x32xf32>
    %c0_83 = arith.constant 0 : index
    %c0_84 = arith.constant 0 : index
    %233 = vector.load %arg10[%c0_83, %c0_84] : memref<3x128xf32, #tpu.memory_space<vmem>>, vector<3x128xf32>
    %234 = vector.extract_strided_slice %233 {offsets = [0, 0], sizes = [1, 32], strides = [1, 1]} : vector<3x128xf32> to vector<1x32xf32>
    %235 = vector.extract_strided_slice %233 {offsets = [1, 0], sizes = [1, 32], strides = [1, 1]} : vector<3x128xf32> to vector<1x32xf32>
    %cst_85 = arith.constant dense<0.000000e+00> : vector<1xf32>
    %236 = vector.multi_reduction <add>, %232, %cst_85 [1] : vector<1x32xf32> to vector<1xf32>
    %237 = vector.shape_cast %236 : vector<1xf32> to vector<1x1xf32>
    %cst_86 = arith.constant 3.200000e+01 : f32
    %238 = vector.broadcast %cst_86 : f32 to vector<1x1xf32>
    %239 = arith.divf %237, %238 : vector<1x1xf32>
    %240 = vector.broadcast %239 : vector<1x1xf32> to vector<1x32xf32>
    %241 = arith.subf %232, %240 : vector<1x32xf32>
    %242 = arith.mulf %241, %241 : vector<1x32xf32>
    %cst_87 = arith.constant dense<0.000000e+00> : vector<1xf32>
    %243 = vector.multi_reduction <add>, %242, %cst_87 [1] : vector<1x32xf32> to vector<1xf32>
    %244 = vector.shape_cast %243 : vector<1xf32> to vector<1x1xf32>
    %cst_88 = arith.constant 3.200000e+01 : f32
    %245 = vector.broadcast %cst_88 : f32 to vector<1x1xf32>
    %246 = arith.divf %244, %245 : vector<1x1xf32>
    %247 = vector.broadcast %239 : vector<1x1xf32> to vector<1x32xf32>
    %248 = arith.subf %232, %247 : vector<1x32xf32>
    %cst_89 = arith.constant 9.99999974E-6 : f32
    %249 = vector.broadcast %cst_89 : f32 to vector<1x1xf32>
    %250 = arith.addf %246, %249 : vector<1x1xf32>
    %251 = math.rsqrt %250 : vector<1x1xf32>
    %252 = vector.broadcast %251 : vector<1x1xf32> to vector<1x32xf32>
    %253 = arith.mulf %248, %252 : vector<1x32xf32>
    %254 = arith.mulf %253, %234 : vector<1x32xf32>
    %255 = arith.addf %254, %235 : vector<1x32xf32>
    %256 = arith.truncf %255 : vector<1x32xf32> to vector<1x32xbf16>
    %c0_90 = arith.constant 0 : index
    %c0_91 = arith.constant 0 : index
    %257 = vector.load %arg9[%c0_90, %c0_91] : memref<32x128xbf16, #tpu.memory_space<vmem>>, vector<32x128xbf16>
    %cst_92 = arith.constant dense<0.000000e+00> : vector<1x128xf32>
    %258 = tpu.matmul %256, %257, %cst_92 {dimension_numbers = #tpu.dot_dimension_numbers<[1], [0], [0], [1], [0, 0, 1, 1], [], []>} : vector<1x32xbf16>, vector<32x128xbf16>, vector<1x128xf32> -> vector<1x128xf32>
    %259 = vector.extract_strided_slice %233 {offsets = [2, 0], sizes = [1, 128], strides = [1, 1]} : vector<3x128xf32> to vector<1x128xf32>
    %260 = arith.addf %258, %259 : vector<1x128xf32>
    %c0_93 = arith.constant 0 : index
    %c0_94 = arith.constant 0 : index
    %c0_95 = arith.constant 0 : index
    %261 = vector.load %arg11[%c0_93, %c0_94, %c0_95] : memref<1x1x128xf32, #tpu.memory_space<vmem>>, vector<1x1x128xf32>
    %262 = vector.shape_cast %261 : vector<1x1x128xf32> to vector<1x128xf32>
    %263 = vector.shape_cast %260 : vector<1x128xf32> to vector<1x1x128xf32>
    tpu.vector_store %arg11[%c0_93, %c0_94, %c0_95], %263 {strides = array<i32>} : memref<1x1x128xf32, #tpu.memory_space<vmem>>, vector<1x1x128xf32>,
    return
  }
  func.func @transform_0(%arg0: i32) -> (i32, i32, i32) {
    %c0_i32 = arith.constant 0 : i32
    %c0_i32_0 = arith.constant 0 : i32
    %c0_i32_1 = arith.constant 0 : i32
    return %arg0, %c0_i32, %c0_i32_0 : i32, i32, i32
  }
  func.func @transform_1(%arg0: i32) -> (i32, i32) {
    %c0_i32 = arith.constant 0 : i32
    %c0_i32_0 = arith.constant 0 : i32
    %c0_i32_1 = arith.constant 0 : i32
    return %c0_i32, %c0_i32_0 : i32, i32
  }
  func.func @transform_2(%arg0: i32) -> (i32, i32) {
    %c0_i32 = arith.constant 0 : i32
    %c0_i32_0 = arith.constant 0 : i32
    %c0_i32_1 = arith.constant 0 : i32
    return %c0_i32, %c0_i32_0 : i32, i32
  }
  func.func @transform_3(%arg0: i32) -> (i32, i32, i32) {
    %c0_i32 = arith.constant 0 : i32
    %c0_i32_0 = arith.constant 0 : i32
    %c0_i32_1 = arith.constant 0 : i32
    %c0_i32_2 = arith.constant 0 : i32
    return %c0_i32, %c0_i32_0, %c0_i32_1 : i32, i32, i32
  }
  func.func @transform_4(%arg0: i32) -> (i32, i32, i32) {
    %c0_i32 = arith.constant 0 : i32
    %c0_i32_0 = arith.constant 0 : i32
    %c0_i32_1 = arith.constant 0 : i32
    %c0_i32_2 = arith.constant 0 : i32
    return %c0_i32, %c0_i32_0, %c0_i32_1 : i32, i32, i32
  }
  func.func @transform_5(%arg0: i32) -> (i32, i32, i32) {
    %c0_i32 = arith.constant 0 : i32
    %c0_i32_0 = arith.constant 0 : i32
    %c0_i32_1 = arith.constant 0 : i32
    %c0_i32_2 = arith.constant 0 : i32
    return %c0_i32, %c0_i32_0, %c0_i32_1 : i32, i32, i32
  }
  func.func @transform_6(%arg0: i32) -> (i32, i32, i32) {
    %c0_i32 = arith.constant 0 : i32
    %c0_i32_0 = arith.constant 0 : i32
    %c0_i32_1 = arith.constant 0 : i32
    %c0_i32_2 = arith.constant 0 : i32
    return %c0_i32, %c0_i32_0, %c0_i32_1 : i32, i32, i32
  }
  func.func @transform_7(%arg0: i32) -> (i32, i32, i32) {
    %c0_i32 = arith.constant 0 : i32
    %c0_i32_0 = arith.constant 0 : i32
    %c0_i32_1 = arith.constant 0 : i32
    %c0_i32_2 = arith.constant 0 : i32
    return %c0_i32, %c0_i32_0, %c0_i32_1 : i32, i32, i32
  }
  func.func @transform_8(%arg0: i32) -> (i32, i32) {
    %c0_i32 = arith.constant 0 : i32
    %c0_i32_0 = arith.constant 0 : i32
    %c0_i32_1 = arith.constant 0 : i32
    return %c0_i32, %c0_i32_0 : i32, i32
  }
  func.func @transform_9(%arg0: i32) -> (i32, i32) {
    %c0_i32 = arith.constant 0 : i32
    %c0_i32_0 = arith.constant 0 : i32
    %c0_i32_1 = arith.constant 0 : i32
    return %c0_i32, %c0_i32_0 : i32, i32
  }
  func.func @transform_10(%arg0: i32) -> (i32, i32, i32) {
    %c0_i32 = arith.constant 0 : i32
    %c0_i32_0 = arith.constant 0 : i32
    %c0_i32_1 = arith.constant 0 : i32
    return %arg0, %c0_i32, %c0_i32_0 : i32, i32, i32
  }
}

</mosaic_0001>

<llo_original>
// kernel: quantum_vit_forward.1
$region0: #{quantum_vit_forward.1}
  #allocation0 [shape = 'u32[]', space=smem, size = 0x4, offset = 0x4, fixed_abs, tag = 'smem constant byte address 0x4 - core index']
  #allocation1 [shape = 'u32[144,128]{1,0:T(1,128)}', space=vmem, size = 0x12000, scoped, tag = 'internal scratch']
  %s0 = inlined_call_operand.vmem [shape: bf16[2,17,64], index: 0, kind: input, shape index: {}]
  %s1 = inlined_call_operand.vmem [shape: bf16[64,32], index: 1, kind: input, shape index: {}]
  %s2 = inlined_call_operand.vmem [shape: f32[17,32], index: 2, kind: input, shape index: {}]
  %s3 = inlined_call_operand.vmem [shape: bf16[2,32,64], index: 3, kind: input, shape index: {}]
  %s4 = inlined_call_operand.vmem [shape: bf16[2,32,64], index: 4, kind: input, shape index: {}]
  %s5 = inlined_call_operand.vmem [shape: bf16[2,64,32], index: 5, kind: input, shape index: {}]
  %s6 = inlined_call_operand.vmem [shape: f32[2,5,32], index: 6, kind: input, shape index: {}]
  %s7 = inlined_call_operand.vmem [shape: f32[2,1,64], index: 7, kind: input, shape index: {}]
  %s8 = inlined_call_operand.vmem [shape: bf16[32,128], index: 8, kind: input, shape index: {}]
  %s9 = inlined_call_operand.vmem [shape: f32[3,128], index: 9, kind: input, shape index: {}]
  %s10 = inlined_call_operand.hbm [shape: f32[2,1,128], index: 10, kind: output, shape index: {}]
  %s11 = sld [smem:[#allocation0]]
  $region73: #{quantum_vit_forward.1} parent=0
    _
  %s13 = ssub.s32 1, %s11
  %s14 = scalar_select 0, %s13, %s11
  $region1: #{quantum_vit_forward.1} parent=0
    #allocation2 [shape = 'u8[1024]{0}', space=vmem, size = 0x400, scoped, tag = 'output window, operand 0']
    #allocation3 [shape = 's32[2]{0}', space=sflag, size = 0x8, scoped, tag = 'scoped memory for quantum_vit_forward.1']
    %15 = vsyncpa [#allocation3], 0
    %s16 = scalar_lea.sflag [#allocation3], 1
    %17 = vsyncpa %s16, 0
    loop: start=0, step=1, limit=4
    $region2: #{quantum_vit_forward.1} parent=1 // loop_pre_header
      _
    $region3: #{quantum_vit_forward.1} parent=1 // loop_header
      %s19 = sphi 0, %s23
      %p20 = scmp.ge.s32.totalorder %s19, 4
      %s29 = sphi 0, %s31
      %s32 = sphi 0, %s29
      %s33 = sphi 0, %s32
      %s49 = sphi 0, %s33
      %s53 = sphi 0, %s53
      %s55 = sphi 0, %s53
      %s56 = sphi 0, %s55
      %s70 = sphi 0, %s56
      %s74 = sphi 0, %s74
      %s76 = sphi 0, %s74
      %s77 = sphi 0, %s76
      %s91 = sphi 0, %s77
      %s95 = sphi 0, %s95
      %s97 = sphi 0, %s95
      %s98 = sphi 0, %s97
      %s112 = sphi 0, %s98
      %s116 = sphi 0, %s116
      %s118 = sphi 0, %s116
      %s119 = sphi 0, %s118
      %s133 = sphi 0, %s119
      %s137 = sphi 0, %s137
      %s139 = sphi 0, %s137
      %s140 = sphi 0, %s139
      %s154 = sphi 0, %s140
      %s158 = sphi 0, %s158
      %s160 = sphi 0, %s158
      %s161 = sphi 0, %s160
      %s175 = sphi 0, %s161
      %s179 = sphi 0, %s179
      %s181 = sphi 0, %s179
      %s182 = sphi 0, %s181
      %s196 = sphi 0, %s182
      %s200 = sphi 0, %s200
      %s202 = sphi 0, %s200
      %s203 = sphi 0, %s202
      %s217 = sphi 0, %s203
      %s221 = sphi 0, %s221
      %s223 = sphi 0, %s221
      %s224 = sphi 0, %s223
      %s238 = sphi 0, %s224
      %s244 = sphi 0, %s246
      %s247 = sphi 0, %s244
      %s248 = sphi 0, %s247
      %s264 = sphi 0, %s248
    $region4: #{quantum_vit_forward.1} parent=1 // loop_header_branch
      %22 = sbr.rel (%p20) target = $region8
    $region5: #{quantum_vit_forward.1} parent=1 // loop_body
      %s24 = ssub.s32 %s19, 1
      %s25 = ssub.s32 %s19, 2
      %s26 = sadd.s32 %s19, 1
      %s27 = ssub.s32 %s19, %s26
      %p28 = scmp.eq.s32.totalorder %s27, 0
      %s30 = sadd.s32 %s29, 1
      %s31 = scalar_select %p28, %s29, %s30
      %p34 = pneg %p28
      %p35 = scmp.eq.s32.totalorder %s19, 1
      %p36 = por %p34, %p35
      %p37 = scmp.ne.s32.totalorder %s29, %s32
      %p38 = scmp.eq.s32.totalorder %s19, 0
      %p39 = por %p37, %p38
      %p40 = scmp.ne.s32.totalorder %s29, %s32
      %p41 = scmp.eq.s32.totalorder %s24, 1
      %p42 = por %p40, %p41
      %p43 = scmp.ne.s32.totalorder %s32, %s33
      %p44 = scmp.eq.s32.totalorder %s24, 0
      %p45 = por %p43, %p44
      %p46 = scmp.ne.s32.totalorder %s32, %s33
      %p47 = scmp.eq.s32.totalorder %s25, 1
      %p48 = por %p46, %p47
      %p50 = scmp.ne.s32.totalorder %s33, %s49
      %p51 = scmp.eq.s32.totalorder %s25, 0
      %p52 = por %p50, %p51
      %s54 = sadd.s32 %s53, 1
      %p57 = scmp.eq.s32.totalorder %s19, 1
      %p58 = scmp.ne.s32.totalorder %s53, %s55
      %p59 = scmp.eq.s32.totalorder %s19, 0
      %p60 = por %p58, %p59
      %p61 = scmp.ne.s32.totalorder %s53, %s55
      %p62 = scmp.eq.s32.totalorder %s24, 1
      %p63 = por %p61, %p62
      %p64 = scmp.ne.s32.totalorder %s55, %s56
      %p65 = scmp.eq.s32.totalorder %s24, 0
      %p66 = por %p64, %p65
      %p67 = scmp.ne.s32.totalorder %s55, %s56
      %p68 = scmp.eq.s32.totalorder %s25, 1
      %p69 = por %p67, %p68
      %p71 = scmp.ne.s32.totalorder %s56, %s70
      %p72 = scmp.eq.s32.totalorder %s25, 0
      %p73 = por %p71, %p72
      %s75 = sadd.s32 %s74, 1
      %p78 = scmp.eq.s32.totalorder %s19, 1
      %p79 = scmp.ne.s32.totalorder %s74, %s76
      %p80 = scmp.eq.s32.totalorder %s19, 0
      %p81 = por %p79, %p80
      %p82 = scmp.ne.s32.totalorder %s74, %s76
      %p83 = scmp.eq.s32.totalorder %s24, 1
      %p84 = por %p82, %p83
      %p85 = scmp.ne.s32.totalorder %s76, %s77
      %p86 = scmp.eq.s32.totalorder %s24, 0
      %p87 = por %p85, %p86
      %p88 = scmp.ne.s32.totalorder %s76, %s77
      %p89 = scmp.eq.s32.totalorder %s25, 1
      %p90 = por %p88, %p89
      %p92 = scmp.ne.s32.totalorder %s77, %s91
      %p93 = scmp.eq.s32.totalorder %s25, 0
      %p94 = por %p92, %p93
      %s96 = sadd.s32 %s95, 1
      %p99 = scmp.eq.s32.totalorder %s19, 1
      %p100 = scmp.ne.s32.totalorder %s95, %s97
      %p101 = scmp.eq.s32.totalorder %s19, 0
      %p102 = por %p100, %p101
      %p103 = scmp.ne.s32.totalorder %s95, %s97
      %p104 = scmp.eq.s32.totalorder %s24, 1
      %p105 = por %p103, %p104
      %p106 = scmp.ne.s32.totalorder %s97, %s98
      %p107 = scmp.eq.s32.totalorder %s24, 0
      %p108 = por %p106, %p107
      %p109 = scmp.ne.s32.totalorder %s97, %s98
      %p110 = scmp.eq.s32.totalorder %s25, 1
      %p111 = por %p109, %p110
      %p113 = scmp.ne.s32.totalorder %s98, %s112
      %p114 = scmp.eq.s32.totalorder %s25, 0
      %p115 = por %p113, %p114
      %s117 = sadd.s32 %s116, 1
      %p120 = scmp.eq.s32.totalorder %s19, 1
      %p121 = scmp.ne.s32.totalorder %s116, %s118
      %p122 = scmp.eq.s32.totalorder %s19, 0
      %p123 = por %p121, %p122
      %p124 = scmp.ne.s32.totalorder %s116, %s118
      %p125 = scmp.eq.s32.totalorder %s24, 1
      %p126 = por %p124, %p125
      %p127 = scmp.ne.s32.totalorder %s118, %s119
      %p128 = scmp.eq.s32.totalorder %s24, 0
      %p129 = por %p127, %p128
      %p130 = scmp.ne.s32.totalorder %s118, %s119
      %p131 = scmp.eq.s32.totalorder %s25, 1
      %p132 = por %p130, %p131
      %p134 = scmp.ne.s32.totalorder %s119, %s133
      %p135 = scmp.eq.s32.totalorder %s25, 0
      %p136 = por %p134, %p135
      %s138 = sadd.s32 %s137, 1
      %p141 = scmp.eq.s32.totalorder %s19, 1
      %p142 = scmp.ne.s32.totalorder %s137, %s139
      %p143 = scmp.eq.s32.totalorder %s19, 0
      %p144 = por %p142, %p143
      %p145 = scmp.ne.s32.totalorder %s137, %s139
      %p146 = scmp.eq.s32.totalorder %s24, 1
      %p147 = por %p145, %p146
      %p148 = scmp.ne.s32.totalorder %s139, %s140
      %p149 = scmp.eq.s32.totalorder %s24, 0
      %p150 = por %p148, %p149
      %p151 = scmp.ne.s32.totalorder %s139, %s140
      %p152 = scmp.eq.s32.totalorder %s25, 1
      %p153 = por %p151, %p152
      %p155 = scmp.ne.s32.totalorder %s140, %s154
      %p156 = scmp.eq.s32.totalorder %s25, 0
      %p157 = por %p155, %p156
      %s159 = sadd.s32 %s158, 1
      %p162 = scmp.eq.s32.totalorder %s19, 1
      %p163 = scmp.ne.s32.totalorder %s158, %s160
      %p164 = scmp.eq.s32.totalorder %s19, 0
      %p165 = por %p163, %p164
      %p166 = scmp.ne.s32.totalorder %s158, %s160
      %p167 = scmp.eq.s32.totalorder %s24, 1
      %p168 = por %p166, %p167
      %p169 = scmp.ne.s32.totalorder %s160, %s161
      %p170 = scmp.eq.s32.totalorder %s24, 0
      %p171 = por %p169, %p170
      %p172 = scmp.ne.s32.totalorder %s160, %s161
      %p173 = scmp.eq.s32.totalorder %s25, 1
      %p174 = por %p172, %p173
      %p176 = scmp.ne.s32.totalorder %s161, %s175
      %p177 = scmp.eq.s32.totalorder %s25, 0
      %p178 = por %p176, %p177
      %s180 = sadd.s32 %s179, 1
      %p183 = scmp.eq.s32.totalorder %s19, 1
      %p184 = scmp.ne.s32.totalorder %s179, %s181
      %p185 = scmp.eq.s32.totalorder %s19, 0
      %p186 = por %p184, %p185
      %p187 = scmp.ne.s32.totalorder %s179, %s181
      %p188 = scmp.eq.s32.totalorder %s24, 1
      %p189 = por %p187, %p188
      %p190 = scmp.ne.s32.totalorder %s181, %s182
      %p191 = scmp.eq.s32.totalorder %s24, 0
      %p192 = por %p190, %p191
      %p193 = scmp.ne.s32.totalorder %s181, %s182
      %p194 = scmp.eq.s32.totalorder %s25, 1
      %p195 = por %p193, %p194
      %p197 = scmp.ne.s32.totalorder %s182, %s196
      %p198 = scmp.eq.s32.totalorder %s25, 0
      %p199 = por %p197, %p198
      %s201 = sadd.s32 %s200, 1
      %p204 = scmp.eq.s32.totalorder %s19, 1
      %p205 = scmp.ne.s32.totalorder %s200, %s202
      %p206 = scmp.eq.s32.totalorder %s19, 0
      %p207 = por %p205, %p206
      %p208 = scmp.ne.s32.totalorder %s200, %s202
      %p209 = scmp.eq.s32.totalorder %s24, 1
      %p210 = por %p208, %p209
      %p211 = scmp.ne.s32.totalorder %s202, %s203
      %p212 = scmp.eq.s32.totalorder %s24, 0
      %p213 = por %p211, %p212
      %p214 = scmp.ne.s32.totalorder %s202, %s203
      %p215 = scmp.eq.s32.totalorder %s25, 1
      %p216 = por %p214, %p215
      %p218 = scmp.ne.s32.totalorder %s203, %s217
      %p219 = scmp.eq.s32.totalorder %s25, 0
      %p220 = por %p218, %p219
      %s222 = sadd.s32 %s221, 1
      %p225 = scmp.eq.s32.totalorder %s19, 1
      %p226 = scmp.ne.s32.totalorder %s221, %s223
      %p227 = scmp.eq.s32.totalorder %s19, 0
      %p228 = por %p226, %p227
      %p229 = scmp.ne.s32.totalorder %s221, %s223
      %p230 = scmp.eq.s32.totalorder %s24, 1
      %p231 = por %p229, %p230
      %p232 = scmp.ne.s32.totalorder %s223, %s224
      %p233 = scmp.eq.s32.totalorder %s24, 0
      %p234 = por %p232, %p233
      %p235 = scmp.ne.s32.totalorder %s223, %s224
      %p236 = scmp.eq.s32.totalorder %s25, 1
      %p237 = por %p235, %p236
      %p239 = scmp.ne.s32.totalorder %s224, %s238
      %p240 = scmp.eq.s32.totalorder %s25, 0
      %p241 = por %p239, %p240
      %s242 = ssub.s32 %s19, %s26
      %p243 = scmp.eq.s32.totalorder %s242, 0
      %s245 = sadd.s32 %s244, 1
      %s246 = scalar_select %p243, %s244, %s245
      %p249 = pneg %p243
      %p250 = scmp.eq.s32.totalorder %s19, 1
      %p251 = por %p249, %p250
      %p252 = scmp.ne.s32.totalorder %s244, %s247
      %p253 = scmp.eq.s32.totalorder %s19, 0
      %p254 = por %p252, %p253
      %p255 = scmp.ne.s32.totalorder %s244, %s247
      %p256 = scmp.eq.s32.totalorder %s24, 1
      %p257 = por %p255, %p256
      %p258 = scmp.ne.s32.totalorder %s247, %s248
      %p259 = scmp.eq.s32.totalorder %s24, 0
      %p260 = por %p258, %p259
      %p261 = scmp.ne.s32.totalorder %s247, %s248
      %p262 = scmp.eq.s32.totalorder %s25, 1
      %p263 = por %p261, %p262
      %p265 = scmp.ne.s32.totalorder %s248, %s264
      %p266 = scmp.eq.s32.totalorder %s25, 0
      %p267 = por %p265, %p266
      %p268 = scmp.le.s32.totalorder 1, %s19
      %p269 = scmp.lt.s32.totalorder %s19, 3
      %p270 = pnand %p268, %p269
      %p271 = pneg %p270
      // Predicated region
      $region9: #{quantum_vit_forward.1} parent=5 // pred_check
        _
      $region10: #{quantum_vit_forward.1} parent=5 // pred_check_branch
        %273 = sbr.rel (%p270) target = $region12
      $region11: #{quantum_vit_forward.1} parent=5 // pred_region
        %s274 = ssub.s32 %s19, 1
        // Predicated region
        $region13: #{quantum_vit_forward.1} parent=11 // pred_check
          %p275 = pneg %p66
        $region14: #{quantum_vit_forward.1} parent=11 // pred_check_branch
          %277 = sbr.rel (%p275) target = $region16
        $region15: #{quantum_vit_forward.1} parent=11 // pred_region
          _
        $region16: #{quantum_vit_forward.1} parent=11 // pred_fallthru
          _
        // Predicated region
        $region17: #{quantum_vit_forward.1} parent=11 // pred_check
          %p278 = pneg %p87
        $region18: #{quantum_vit_forward.1} parent=11 // pred_check_branch
          %280 = sbr.rel (%p278) target = $region20
        $region19: #{quantum_vit_forward.1} parent=11 // pred_region
          _
        $region20: #{quantum_vit_forward.1} parent=11 // pred_fallthru
          _
        // Predicated region
        $region21: #{quantum_vit_forward.1} parent=11 // pred_check
          %p281 = pneg %p108
        $region22: #{quantum_vit_forward.1} parent=11 // pred_check_branch
          %283 = sbr.rel (%p281) target = $region24
        $region23: #{quantum_vit_forward.1} parent=11 // pred_region
          _
        $region24: #{quantum_vit_forward.1} parent=11 // pred_fallthru
          _
        // Predicated region
        $region25: #{quantum_vit_forward.1} parent=11 // pred_check
          %p284 = pneg %p129
        $region26: #{quantum_vit_forward.1} parent=11 // pred_check_branch
          %286 = sbr.rel (%p284) target = $region28
        $region27: #{quantum_vit_forward.1} parent=11 // pred_region
          _
        $region28: #{quantum_vit_forward.1} parent=11 // pred_fallthru
          _
        // Predicated region
        $region29: #{quantum_vit_forward.1} parent=11 // pred_check
          %p287 = pneg %p150
        $region30: #{quantum_vit_forward.1} parent=11 // pred_check_branch
          %289 = sbr.rel (%p287) target = $region32
        $region31: #{quantum_vit_forward.1} parent=11 // pred_region
          _
        $region32: #{quantum_vit_forward.1} parent=11 // pred_fallthru
          _
        // Predicated region
        $region33: #{quantum_vit_forward.1} parent=11 // pred_check
          %p290 = pneg %p171
        $region34: #{quantum_vit_forward.1} parent=11 // pred_check_branch
          %292 = sbr.rel (%p290) target = $region36
        $region35: #{quantum_vit_forward.1} parent=11 // pred_region
          _
        $region36: #{quantum_vit_forward.1} parent=11 // pred_fallthru
          _
        // Predicated region
        $region37: #{quantum_vit_forward.1} parent=11 // pred_check
          %p293 = pneg %p192
        $region38: #{quantum_vit_forward.1} parent=11 // pred_check_branch
          %295 = sbr.rel (%p293) target = $region40
        $region39: #{quantum_vit_forward.1} parent=11 // pred_region
          _
        $region40: #{quantum_vit_forward.1} parent=11 // pred_fallthru
          _
        // Predicated region
        $region41: #{quantum_vit_forward.1} parent=11 // pred_check
          %p296 = pneg %p213
        $region42: #{quantum_vit_forward.1} parent=11 // pred_check_branch
          %298 = sbr.rel (%p296) target = $region44
        $region43: #{quantum_vit_forward.1} parent=11 // pred_region
          _
        $region44: #{quantum_vit_forward.1} parent=11 // pred_fallthru
          _
        // Predicated region
        $region45: #{quantum_vit_forward.1} parent=11 // pred_check
          %p299 = pneg %p234
        $region46: #{quantum_vit_forward.1} parent=11 // pred_check_branch
          %301 = sbr.rel (%p299) target = $region48
        $region47: #{quantum_vit_forward.1} parent=11 // pred_region
          _
        $region48: #{quantum_vit_forward.1} parent=11 // pred_fallthru
          _
      $region12: #{quantum_vit_forward.1} parent=5 // pred_fallthru
        _
      %p302 = scmp.lt.s32.totalorder %s19, 2
      // Predicated region
      $region49: #{quantum_vit_forward.1} parent=5 // pred_check
        %p303 = pneg %p302
      $region50: #{quantum_vit_forward.1} parent=5 // pred_check_branch
        %305 = sbr.rel (%p303) target = $region52
      $region51: #{quantum_vit_forward.1} parent=5 // pred_region
        // Predicated region
        $region53: #{quantum_vit_forward.1} parent=51 // pred_check
          %p306 = pneg %p39
        $region54: #{quantum_vit_forward.1} parent=51 // pred_check_branch
          %308 = sbr.rel (%p306) target = $region56
        $region55: #{quantum_vit_forward.1} parent=51 // pred_region
          %p309 = scmp.lt.s32.totalorder %s19, 1
          %s310 = scalar_select %p309, %s19, 1
          %s311 = smul.addr %s310, 3
          %s312 = smul.addr %s311, 4
          %s313 = scalar_lea.vmem %s0, %s312
        $region56: #{quantum_vit_forward.1} parent=51 // pred_fallthru
          _
      $region52: #{quantum_vit_forward.1} parent=5 // pred_fallthru
        _
      %p314 = scmp.le.s32.totalorder 1, %s19
      %p315 = scmp.lt.s32.totalorder %s19, 3
      %p316 = pnand %p314, %p315
      %p317 = pneg %p316
      // Predicated region
      $region57: #{quantum_vit_forward.1} parent=5 // pred_check
        _
      $region58: #{quantum_vit_forward.1} parent=5 // pred_check_branch
        %319 = sbr.rel (%p316) target = $region60
      $region59: #{quantum_vit_forward.1} parent=5 // pred_region
        %s320 = ssub.s32 %s19, 1
        %p321 = scmp.lt.s32.totalorder %s24, 1
        %s322 = scalar_select %p321, %s24, 1
        %s323 = smul.addr %s322, 3
        %s324 = smul.addr %s323, 4
        %s325 = scalar_lea.vmem %s0, %s324
        %p326 = pneg %p45
        %p327 = pneg %p42
        %p328 = pneg %p66
        %p329 = pneg %p63
        %p330 = pneg %p87
        %p331 = pneg %p84
        %p332 = pneg %p108
        %p333 = pneg %p105
        %p334 = pneg %p129
        %p335 = pneg %p126
        %p336 = pneg %p150
        %p337 = pneg %p147
        %p338 = pneg %p171
        %p339 = pneg %p168
        %p340 = pneg %p192
        %p341 = pneg %p189
        %p342 = pneg %p213
        %p343 = pneg %p210
        %p344 = pneg %p234
        %p345 = pneg %p231
        %p346 = pneg %p260
        %p347 = pneg %p257
        %s348 = sand.u32 %s247, 1
        %s349 = scalar_lea.sflag [#allocation3], %s348
        %s350 = sand.u32 %s247, 1
        %s351 = scalar_lea.vmem [#allocation2], %s350
        %p352 = scmp.lt.s32.totalorder %s24, 1
        %s353 = scalar_select %p352, %s24, 1
        %s354 = smul.addr %s353, 3
        %s355 = smul.addr %s354, 4
        %s356 = scalar_lea.vmem %s0, %s355
        %v358 = vld [vmem:[%s356] sm:$0xf]
        %v359 = vld [vmem:[%s356 + $0x4] sm:$0xf]
        %v360 = vld [vmem:[%s356 + $0x8] sm:$0x1]
        %v361 = vld [vmem:[%s1] sm:$0xf]
        %v362 = vld [vmem:[%s1 + $0x4] sm:$0xf]
        %v363 = vld [vmem:[%s1 + $0x8] sm:$0xf]
        %v364 = vld [vmem:[%s1 + $0xc] sm:$0xf]
        %v365 = vld [vmem:[%s1 + $0x10] sm:$0xf]
        %v366 = vld [vmem:[%s1 + $0x14] sm:$0xf]
        %v367 = vld [vmem:[%s1 + $0x18] sm:$0xf]
        %v368 = vld [vmem:[%s1 + $0x1c] sm:$0xf]
        %v369 = vld [vmem:[%s2] sm:$0xff]
        %v370 = vld [vmem:[%s2 + $0x8] sm:$0xff]
        %v371 = vld [vmem:[%s2 + $0x10] sm:$0x1]
        %v375 = vunpack.c.l.b16 %v358
        %v376 = vunpack.c.l.b16 %v359
        %v377 = vunpack.c.l.b16 %v360
        %v378 = vpack.c.b16 %v376, %v375
        %v379 = vpack.c.b16 %v377, %v377
        %v388 = vunpack.c.l.b16 %v361
        %v389 = vunpack.c.l.b16 %v362
        %v390 = vunpack.c.l.b16 %v363
        %v391 = vunpack.c.l.b16 %v364
        %v392 = vunpack.c.l.b16 %v365
        %v393 = vunpack.c.l.b16 %v366
        %v394 = vunpack.c.l.b16 %v367
        %v395 = vunpack.c.l.b16 %v368
        %v396 = vpack.c.b16 %v389, %v388
        %v397 = vpack.c.b16 %v391, %v390
        %v398 = vpack.c.b16 %v393, %v392
        %v399 = vpack.c.b16 %v395, %v394
        %vm404 = vcmask 523264
        %v406 = vsel %vm404, %v378, 0
        %v409 = vsel %vm404, %v379, 0
        %411 = vmatprep.subr.bf16.mxu0 0
        %412 = vmatpush1.bf16.msra.mxu0 0
        %413 = vmatprep.subr.bf16.mxu0 0
        %414 = vmatpush1.bf16.msra.mxu0 0
        %415 = vmatprep.subr.bf16.mxu0 0
        %416 = vmatpush1.bf16.msra.mxu0 0
        %417 = vmatprep.subr.bf16.mxu0 0
        %418 = vmatpush1.bf16.msra.mxu0 0
        %419 = vmatprep.subr.bf16.mxu0 0
        %420 = vmatpush1.bf16.msra.mxu0 %v399
        %421 = vmatprep.subr.bf16.mxu0 0
        %422 = vmatpush1.bf16.msra.mxu0 %v398
        %423 = vmatprep.subr.bf16.mxu0 0
        %424 = vmatpush1.bf16.msra.mxu0 %v397
        %425 = vmatprep.subr.bf16.mxu0 0
        %426 = vmatpush1.bf16.msra.mxu0 %v396
        %427 = vmatprep.subr.bf16.mxu0 0
        %428 = vmatpush2.bf16.msra.mxu0 0
        %429 = vmatprep.subr.bf16.mxu0 0
        %430 = vmatpush2.bf16.msra.mxu0 0
        %431 = vmatprep.subr.bf16.mxu0 0
        %432 = vmatpush2.bf16.msra.mxu0 0
        %433 = vmatprep.subr.bf16.mxu0 0
        %434 = vmatpush2.bf16.msra.mxu0 0
        %435 = vmatprep.subr.bf16.mxu0 0
        %436 = vmatpush2.bf16.msra.mxu0 0
        %437 = vmatprep.subr.bf16.mxu0 0
        %438 = vmatpush2.bf16.msra.mxu0 0
        %439 = vmatprep.subr.bf16.mxu0 0
        %440 = vmatpush2.bf16.msra.mxu0 0
        %441 = vmatprep.subr.bf16.mxu0 0
        %442 = vmatpush2.bf16.msra.mxu0 0
        %443 = vmatprep.mubr.bf16.mxu0 0
        %444 = vmatmul.mubr.bf16.gmra.mxu0 %v406
        %v445 = vpop.f32.mrf.mxu0
        %v446 = vadd.f32 %v369, %v445
        %v447 = vpop.f32.mrf.mxu0
        %v448 = vpop.f32.mrf.mxu0
        %v449 = vadd.f32 %v370, %v448
        %v450 = vpop.f32.mrf.mxu0
        %451 = vmatprep.mubr.bf16.mxu0 0
        %452 = vmatmul.mubr.bf16.gmra.mxu0 %v409
        %v453 = vpop.f32.mrf.mxu0
        %v454 = vadd.f32 %v371, %v453
        %v455 = vpop.f32.mrf.mxu0
        %v456 = vpop.f32.mrf.mxu0
        %v457 = vpop.f32.mrf.mxu0
        %458 = vdwg.mxu0
        %v459 = vld [vmem:[%s6] sm:$0x1f]
        %v460 = vld [vmem:[%s7] sm:$0x1]
        %v461 = vld [vmem:[%s3] sm:$0xf]
        %v462 = vld [vmem:[%s3 + $0x4] sm:$0xf]
        %v463 = vld [vmem:[%s3 + $0x8] sm:$0xf]
        %v464 = vld [vmem:[%s3 + $0xc] sm:$0xf]
        %vm465 = vcmask 261120
        %v466 = vsel %vm465, %v446, 0.0
        %467 = vadd.xlane.f32.xlu0 %v466
        %v468 = vpop.xlane.xlu0 %467
        %v469 = vsel %vm465, %v449, 0.0
        %470 = vadd.xlane.f32.xlu0 %v469
        %v471 = vpop.xlane.xlu0 %470
        %vm472 = vcmask 253952
        %v473 = vsel %vm472, %v454, 0.0
        %474 = vadd.xlane.f32.xlu0 %v473
        %v475 = vpop.xlane.xlu0 %474
        %v476 = vrcp.pop 32.0
        %v477 = vmul.f32 %v468, %v476
        %v478 = vmul.f32 %v471, %v476
        %v479 = vmul.f32 %v475, %v476
        %v480 = vsub.f32 %v446, %v477
        %v481 = vsub.f32 %v449, %v478
        %v482 = vsub.f32 %v454, %v479
        %v483 = vmul.f32 %v480, %v480
        %v484 = vmul.f32 %v481, %v481
        %v485 = vmul.f32 %v482, %v482
        %v486 = vsel %vm465, %v483, 0.0
        %487 = vadd.xlane.f32.xlu0 %v486
        %v488 = vpop.xlane.xlu0 %487
        %v489 = vsel %vm465, %v484, 0.0
        %490 = vadd.xlane.f32.xlu0 %v489
        %v491 = vpop.xlane.xlu0 %490
        %v492 = vsel %vm472, %v485, 0.0
        %493 = vadd.xlane.f32.xlu0 %v492
        %v494 = vpop.xlane.xlu0 %493
        %v495 = vmul.f32 %v488, %v476
        %v496 = vmul.f32 %v491, %v476
        %v497 = vmul.f32 %v494, %v476
        %v498 = vadd.f32 %v495, 1e-05
        %v499 = vadd.f32 %v496, 1e-05
        %v500 = vadd.f32 %v497, 1e-05
        %v501 = vrsqrt.pop %v498
        %v502 = vrsqrt.pop %v499
        %v503 = vrsqrt.pop %v500
        %v504 = vmul.f32 %v480, %v501
        %v505 = vmul.f32 %v481, %v502
        %v506 = vmul.f32 %v482, %v503
        %v507 = vlaneseq
        %v508 = vshrl.u32 %v507, 7
        %v509 = vsub.s32 0, %v508
        %v510 = vrot.slane %v459, %v509
        %v511 = vmul.f32 %v504, %v510
        %v512 = vmul.f32 %v505, %v510
        %v513 = vmul.f32 %v506, %v510
        %v514 = vlaneseq
        %v515 = vshrl.u32 %v514, 7
        %v516 = vsub.s32 1, %v515
        %v517 = vrot.slane %v459, %v516
        %v518 = vadd.f32 %v511, %v517
        %v519 = vadd.f32 %v512, %v517
        %v520 = vadd.f32 %v513, %v517
        %v521 = vmul.f32 %v518, %v518
        %v522 = vmul.f32 %v519, %v519
        %v523 = vmul.f32 %v520, %v520
        %v524 = vadd.f32 %v521, 0.0001
        %v525 = vadd.f32 %v522, 0.0001
        %v526 = vadd.f32 %v523, 0.0001
        %v527 = vsel %vm465, %v524, 0.0
        %v528 = vsel %vm465, %v525, 0.0
        %v529 = vadd.f32 %v527, %v528
        %v530 = vsel %vm472, %v526, 0.0
        %v531 = vadd.f32 %v529, %v530
        %v532 = vrot.slane %v531, 4
        %v533 = vadd.f32 %v531, %v532
        %v534 = vrot.slane %v533, 2
        %v535 = vadd.f32 %v533, %v534
        %v536 = vrot.slane %v535, 1
        %v537 = vadd.f32 %v535, %v536
        %v538 = vadd.f32 %v537, 1e-08
        %v539 = vrsqrt.pop %v538
        %v540 = vmul.f32 %v518, %v539
        %v541 = vmul.f32 %v519, %v539
        %v542 = vmul.f32 %v520, %v539
        %v543 = vpack.c.bf16 %v541, %v540
        %v544 = vpack.c.bf16 %v542, %v542
        %v549 = vunpack.c.l.b16 %v461
        %v550 = vunpack.c.l.b16 %v462
        %v551 = vunpack.c.l.b16 %v463
        %v552 = vunpack.c.l.b16 %v464
        %v553 = vpack.c.b16 %v550, %v549
        %v554 = vpack.c.b16 %v552, %v551
        %v558 = vsel %vm465, %v543, 0
        %v561 = vsel %vm465, %v544, 0
        %563 = vmatprep.subr.bf16.mxu0 0
        %564 = vmatpush1.bf16.msra.mxu0 0
        %565 = vmatprep.subr.bf16.mxu0 0
        %566 = vmatpush1.bf16.msra.mxu0 0
        %567 = vmatprep.subr.bf16.mxu0 0
        %568 = vmatpush1.bf16.msra.mxu0 0
        %569 = vmatprep.subr.bf16.mxu0 0
        %570 = vmatpush1.bf16.msra.mxu0 0
        %571 = vmatprep.subr.bf16.mxu0 0
        %572 = vmatpush1.bf16.msra.mxu0 0
        %573 = vmatprep.subr.bf16.mxu0 0
        %574 = vmatpush1.bf16.msra.mxu0 0
        %575 = vmatprep.subr.bf16.mxu0 0
        %576 = vmatpush1.bf16.msra.mxu0 %v554
        %577 = vmatprep.subr.bf16.mxu0 0
        %578 = vmatpush1.bf16.msra.mxu0 %v553
        %579 = vmatprep.subr.bf16.mxu0 0
        %580 = vmatpush2.bf16.msra.mxu0 0
        %581 = vmatprep.subr.bf16.mxu0 0
        %582 = vmatpush2.bf16.msra.mxu0 0
        %583 = vmatprep.subr.bf16.mxu0 0
        %584 = vmatpush2.bf16.msra.mxu0 0
        %585 = vmatprep.subr.bf16.mxu0 0
        %586 = vmatpush2.bf16.msra.mxu0 0
        %587 = vmatprep.subr.bf16.mxu0 0
        %588 = vmatpush2.bf16.msra.mxu0 0
        %589 = vmatprep.subr.bf16.mxu0 0
        %590 = vmatpush2.bf16.msra.mxu0 0
        %591 = vmatprep.subr.bf16.mxu0 0
        %592 = vmatpush2.bf16.msra.mxu0 0
        %593 = vmatprep.subr.bf16.mxu0 0
        %594 = vmatpush2.bf16.msra.mxu0 0
        %595 = vmatprep.mubr.bf16.mxu0 0
        %596 = vmatmul.mubr.bf16.gmra.mxu0 %v558
        %v597 = vpop.f32.mrf.mxu0
        %v598 = vadd.f32 0.0, %v597
        %v599 = vpop.f32.mrf.mxu0
        %v600 = vpop.f32.mrf.mxu0
        %v601 = vadd.f32 0.0, %v600
        %v602 = vpop.f32.mrf.mxu0
        %603 = vmatprep.mubr.bf16.mxu0 0
        %604 = vmatmul.mubr.bf16.gmra.mxu0 %v561
        %v605 = vpop.f32.mrf.mxu0
        %v606 = vadd.f32 0.0, %v605
        %v607 = vpop.f32.mrf.mxu0
        %v608 = vpop.f32.mrf.mxu0
        %v609 = vpop.f32.mrf.mxu0
        %610 = vdwg.mxu0
        %v611 = vand.u32 2147483647, %v598
        %v612 = vand.u32 2147483647, %v601
        %v613 = vand.u32 2147483647, %v606
        %v614 = vpack.c.bf16 %v601, %v598
        %v615 = vpack.c.bf16 %v606, %v606
        %618 = vrot.lane.b32.xlu0 %v614, 96
        %v619 = vpop.permute.xlu0 %618
        %620 = vrot.lane.b32.xlu0 %v615, 96
        %v621 = vpop.permute.xlu0 %620
        %v623 = vsel %vm465, %v619, 0
        %v626 = vsel %vm465, %v621, 0
        %628 = vmatprep.subr.bf16.mxu0 0
        %629 = vmatpush1.bf16.xpose.msra.mxu0 0
        %630 = vmatprep.subr.bf16.mxu0 0
        %631 = vmatpush1.bf16.xpose.msra.mxu0 0
        %632 = vmatprep.subr.bf16.mxu0 0
        %633 = vmatpush1.bf16.xpose.msra.mxu0 0
        %634 = vmatprep.subr.bf16.mxu0 0
        %635 = vmatpush1.bf16.xpose.msra.mxu0 0
        %636 = vmatprep.subr.bf16.mxu0 0
        %637 = vmatpush1.bf16.xpose.msra.mxu0 0
        %638 = vmatprep.subr.bf16.mxu0 0
        %639 = vmatpush1.bf16.xpose.msra.mxu0 0
        %640 = vmatprep.subr.bf16.mxu0 0
        %641 = vmatpush1.bf16.xpose.msra.mxu0 %v561
        %642 = vmatprep.subr.bf16.mxu0 0
        %643 = vmatpush1.bf16.xpose.msra.mxu0 %v558
        %644 = vmatprep.subr.bf16.mxu0 0
        %645 = vmatpush2.bf16.xpose.msra.mxu0 0
        %646 = vmatprep.subr.bf16.mxu0 0
        %647 = vmatpush2.bf16.xpose.msra.mxu0 0
        %648 = vmatprep.subr.bf16.mxu0 0
        %649 = vmatpush2.bf16.xpose.msra.mxu0 0
        %650 = vmatprep.subr.bf16.mxu0 0
        %651 = vmatpush2.bf16.xpose.msra.mxu0 0
        %652 = vmatprep.subr.bf16.mxu0 0
        %653 = vmatpush2.bf16.xpose.msra.mxu0 0
        %654 = vmatprep.subr.bf16.mxu0 0
        %655 = vmatpush2.bf16.xpose.msra.mxu0 0
        %656 = vmatprep.subr.bf16.mxu0 0
        %657 = vmatpush2.bf16.xpose.msra.mxu0 0
        %658 = vmatprep.subr.bf16.mxu0 0
        %659 = vmatpush2.bf16.xpose.msra.mxu0 0
        %660 = vmatprep.mubr.bf16.mxu0 0
        %661 = vmatmul.mubr.bf16.gmra.mxu0 %v623
        %v662 = vpop.f32.mrf.mxu0
        %v663 = vadd.f32 0.0, %v662
        %v664 = vpop.f32.mrf.mxu0
        %v665 = vpop.f32.mrf.mxu0
        %v666 = vadd.f32 0.0, %v665
        %v667 = vpop.f32.mrf.mxu0
        %668 = vmatprep.mubr.bf16.mxu0 0
        %669 = vmatmul.mubr.bf16.gmra.mxu0 %v626
        %v670 = vpop.f32.mrf.mxu0
        %v671 = vadd.f32 0.0, %v670
        %v672 = vpop.f32.mrf.mxu0
        %v673 = vpop.f32.mrf.mxu0
        %v674 = vpop.f32.mrf.mxu0
        %675 = vdwg.mxu0
        %v676 = vand.u32 2147483647, %v663
        %v677 = vand.u32 2147483647, %v666
        %v678 = vand.u32 2147483647, %v671
        %vm679 = vcmask 138240
        %v680 = vsel %vm679, %v676, -inf
        %681 = vmax.xlane.f32.xlu0 %v680
        %v682 = vpop.xlane.xlu0 %681
        %v683 = vsel %vm679, %v677, -inf
        %684 = vmax.xlane.f32.xlu0 %v683
        %v685 = vpop.xlane.xlu0 %684
        %vm686 = vcmask 131072
        %v687 = vsel %vm686, %v678, -inf
        %688 = vmax.xlane.f32.xlu0 %v687
        %v689 = vpop.xlane.xlu0 %688
        %v690 = vsub.f32 %v676, %v682
        %v691 = vsub.f32 %v677, %v685
        %v692 = vsub.f32 %v678, %v689
        %v693 = vmul.f32 %v690, 1.442695
        %v694 = vpow.pop %v693
        %v695 = vmul.f32 %v691, 1.442695
        %v696 = vpow.pop %v695
        %v697 = vmul.f32 %v692, 1.442695
        %v698 = vpow.pop %v697
        %v699 = vsel %vm679, %v694, 0.0
        %700 = vadd.xlane.f32.xlu0 %v699
        %v701 = vpop.xlane.xlu0 %700
        %v702 = vsel %vm679, %v696, 0.0
        %703 = vadd.xlane.f32.xlu0 %v702
        %v704 = vpop.xlane.xlu0 %703
        %v705 = vsel %vm686, %v698, 0.0
        %706 = vadd.xlane.f32.xlu0 %v705
        %v707 = vpop.xlane.xlu0 %706
        %v708 = vrcp.pop %v701
        %v709 = vrcp.pop %v704
        %v710 = vrcp.pop %v707
        %v711 = vmul.f32 %v694, %v708
        %v712 = vmul.f32 %v696, %v709
        %v713 = vmul.f32 %v698, %v710
        %v714 = vpack.c.bf16 %v712, %v711
        %v715 = vpack.c.bf16 %v713, %v713
        %v716 = vpack.c.bf16 %v612, %v611
        %v717 = vpack.c.bf16 %v613, %v613
        %v719 = vsel %vm679, %v714, 0
        %v722 = vsel %vm679, %v715, 0
        %vm724 = vcmask 1040384
        %v725 = vsel 0, 4294967295, 65535
        %v726 = vsel %vm724, %v725, 0
        %v728 = vand.u32 %v717, %v726
        %730 = vmatprep.subr.bf16.mxu0 0
        %731 = vmatpush1.bf16.msra.mxu0 0
        %732 = vmatprep.subr.bf16.mxu0 0
        %733 = vmatpush1.bf16.msra.mxu0 0
        %734 = vmatprep.subr.bf16.mxu0 0
        %735 = vmatpush1.bf16.msra.mxu0 0
        %736 = vmatprep.subr.bf16.mxu0 0
        %737 = vmatpush1.bf16.msra.mxu0 0
        %738 = vmatprep.subr.bf16.mxu0 0
        %739 = vmatpush1.bf16.msra.mxu0 0
        %740 = vmatprep.subr.bf16.mxu0 0
        %741 = vmatpush1.bf16.msra.mxu0 0
        %742 = vmatprep.subr.bf16.mxu0 0
        %743 = vmatpush1.bf16.msra.mxu0 %v728
        %744 = vmatprep.subr.bf16.mxu0 0
        %745 = vmatpush1.bf16.msra.mxu0 %v716
        %746 = vmatprep.subr.bf16.mxu0 0
        %747 = vmatpush2.bf16.msra.mxu0 0
        %748 = vmatprep.subr.bf16.mxu0 0
        %749 = vmatpush2.bf16.msra.mxu0 0
        %750 = vmatprep.subr.bf16.mxu0 0
        %751 = vmatpush2.bf16.msra.mxu0 0
        %752 = vmatprep.subr.bf16.mxu0 0
        %753 = vmatpush2.bf16.msra.mxu0 0
        %754 = vmatprep.subr.bf16.mxu0 0
        %755 = vmatpush2.bf16.msra.mxu0 0
        %756 = vmatprep.subr.bf16.mxu0 0
        %757 = vmatpush2.bf16.msra.mxu0 0
        %758 = vmatprep.subr.bf16.mxu0 0
        %759 = vmatpush2.bf16.msra.mxu0 0
        %760 = vmatprep.subr.bf16.mxu0 0
        %761 = vmatpush2.bf16.msra.mxu0 0
        %762 = vmatprep.mubr.bf16.mxu0 0
        %763 = vmatmul.mubr.bf16.gmra.mxu0 %v719
        %v764 = vpop.f32.mrf.mxu0
        %v765 = vadd.f32 0.0, %v764
        %v766 = vpop.f32.mrf.mxu0
        %v767 = vpop.f32.mrf.mxu0
        %v768 = vadd.f32 0.0, %v767
        %v769 = vpop.f32.mrf.mxu0
        %770 = vmatprep.mubr.bf16.mxu0 0
        %771 = vmatmul.mubr.bf16.gmra.mxu0 %v722
        %v772 = vpop.f32.mrf.mxu0
        %v773 = vadd.f32 0.0, %v772
        %v774 = vpop.f32.mrf.mxu0
        %v775 = vpop.f32.mrf.mxu0
        %v776 = vpop.f32.mrf.mxu0
        %777 = vdwg.mxu0
        %v778 = vadd.f32 %v446, %v765
        %v779 = vadd.f32 %v449, %v768
        %v780 = vadd.f32 %v454, %v773
        %v781 = vsel %vm465, %v778, 0.0
        %782 = vadd.xlane.f32.xlu0 %v781
        %v783 = vpop.xlane.xlu0 %782
        %v784 = vsel %vm465, %v779, 0.0
        %785 = vadd.xlane.f32.xlu0 %v784
        %v786 = vpop.xlane.xlu0 %785
        %v787 = vsel %vm472, %v780, 0.0
        %788 = vadd.xlane.f32.xlu0 %v787
        %v789 = vpop.xlane.xlu0 %788
        %v790 = vmul.f32 %v783, %v476
        %v791 = vmul.f32 %v786, %v476
        %v792 = vmul.f32 %v789, %v476
        %v793 = vsub.f32 %v778, %v790
        %v794 = vsub.f32 %v779, %v791
        %v795 = vsub.f32 %v780, %v792
        %v796 = vmul.f32 %v793, %v793
        %v797 = vmul.f32 %v794, %v794
        %v798 = vmul.f32 %v795, %v795
        %v799 = vsel %vm465, %v796, 0.0
        %800 = vadd.xlane.f32.xlu0 %v799
        %v801 = vpop.xlane.xlu0 %800
        %v802 = vsel %vm465, %v797, 0.0
        %803 = vadd.xlane.f32.xlu0 %v802
        %v804 = vpop.xlane.xlu0 %803
        %v805 = vsel %vm472, %v798, 0.0
        %806 = vadd.xlane.f32.xlu0 %v805
        %v807 = vpop.xlane.xlu0 %806
        %v808 = vmul.f32 %v801, %v476
        %v809 = vmul.f32 %v804, %v476
        %v810 = vmul.f32 %v807, %v476
        %v811 = vadd.f32 %v808, 1e-05
        %v812 = vadd.f32 %v809, 1e-05
        %v813 = vadd.f32 %v810, 1e-05
        %v814 = vrsqrt.pop %v811
        %v815 = vrsqrt.pop %v812
        %v816 = vrsqrt.pop %v813
        %v817 = vmul.f32 %v793, %v814
        %v818 = vmul.f32 %v794, %v815
        %v819 = vmul.f32 %v795, %v816
        %v820 = vlaneseq
        %v821 = vshrl.u32 %v820, 7
        %v822 = vsub.s32 2, %v821
        %v823 = vrot.slane %v459, %v822
        %v824 = vmul.f32 %v817, %v823
        %v825 = vmul.f32 %v818, %v823
        %v826 = vmul.f32 %v819, %v823
        %v827 = vlaneseq
        %v828 = vshrl.u32 %v827, 7
        %v829 = vsub.s32 3, %v828
        %v830 = vrot.slane %v459, %v829
        %v831 = vadd.f32 %v824, %v830
        %v832 = vadd.f32 %v825, %v830
        %v833 = vadd.f32 %v826, %v830
        %v834 = vpack.c.bf16 %v832, %v831
        %v835 = vpack.c.bf16 %v833, %v833
        %v836 = vld [vmem:[%s4] sm:$0xf]
        %v837 = vld [vmem:[%s4 + $0x4] sm:$0xf]
        %v838 = vld [vmem:[%s4 + $0x8] sm:$0xf]
        %v839 = vld [vmem:[%s4 + $0xc] sm:$0xf]
        %v841 = vlaneseq
        %v842 = vshrl.u32 %v841, 7
        %v843 = vsub.s32 0, %v842
        %v844 = vrot.slane %v460, %v843
        %v850 = vunpack.c.l.b16 %v836
        %v851 = vunpack.c.l.b16 %v837
        %v852 = vunpack.c.l.b16 %v838
        %v853 = vunpack.c.l.b16 %v839
        %v854 = vpack.c.b16 %v851, %v850
        %v855 = vpack.c.b16 %v853, %v852
        %v859 = vsel %vm465, %v834, 0
        %v862 = vsel %vm465, %v835, 0
        %864 = vmatprep.subr.bf16.mxu0 0
        %865 = vmatpush1.bf16.msra.mxu0 0
        %866 = vmatprep.subr.bf16.mxu0 0
        %867 = vmatpush1.bf16.msra.mxu0 0
        %868 = vmatprep.subr.bf16.mxu0 0
        %869 = vmatpush1.bf16.msra.mxu0 0
        %870 = vmatprep.subr.bf16.mxu0 0
        %871 = vmatpush1.bf16.msra.mxu0 0
        %872 = vmatprep.subr.bf16.mxu0 0
        %873 = vmatpush1.bf16.msra.mxu0 0
        %874 = vmatprep.subr.bf16.mxu0 0
        %875 = vmatpush1.bf16.msra.mxu0 0
        %876 = vmatprep.subr.bf16.mxu0 0
        %877 = vmatpush1.bf16.msra.mxu0 %v855
        %878 = vmatprep.subr.bf16.mxu0 0
        %879 = vmatpush1.bf16.msra.mxu0 %v854
        %880 = vmatprep.subr.bf16.mxu0 0
        %881 = vmatpush2.bf16.msra.mxu0 0
        %882 = vmatprep.subr.bf16.mxu0 0
        %883 = vmatpush2.bf16.msra.mxu0 0
        %884 = vmatprep.subr.bf16.mxu0 0
        %885 = vmatpush2.bf16.msra.mxu0 0
        %886 = vmatprep.subr.bf16.mxu0 0
        %887 = vmatpush2.bf16.msra.mxu0 0
        %888 = vmatprep.subr.bf16.mxu0 0
        %889 = vmatpush2.bf16.msra.mxu0 0
        %890 = vmatprep.subr.bf16.mxu0 0
        %891 = vmatpush2.bf16.msra.mxu0 0
        %892 = vmatprep.subr.bf16.mxu0 0
        %893 = vmatpush2.bf16.msra.mxu0 0
        %894 = vmatprep.subr.bf16.mxu0 0
        %895 = vmatpush2.bf16.msra.mxu0 0
        %896 = vmatprep.mubr.bf16.mxu0 0
        %897 = vmatmul.mubr.bf16.gmra.mxu0 %v859
        %v898 = vpop.f32.mrf.mxu0
        %v899 = vadd.f32 %v844, %v898
        %v900 = vpop.f32.mrf.mxu0
        %v901 = vpop.f32.mrf.mxu0
        %v902 = vadd.f32 %v844, %v901
        %v903 = vpop.f32.mrf.mxu0
        %904 = vmatprep.mubr.bf16.mxu0 0
        %905 = vmatmul.mubr.bf16.gmra.mxu0 %v862
        %v906 = vpop.f32.mrf.mxu0
        %v907 = vadd.f32 %v844, %v906
        %v908 = vpop.f32.mrf.mxu0
        %v909 = vpop.f32.mrf.mxu0
        %v910 = vpop.f32.mrf.mxu0
        %911 = vdwg.mxu0
        %v912 = vmul.f32 %v899, %v899
        %v913 = vmul.f32 %v902, %v902
        %v914 = vmul.f32 %v907, %v907
        %v915 = vmul.f32 %v899, %v912
        %v916 = vmul.f32 %v902, %v913
        %v917 = vmul.f32 %v907, %v914
        %v918 = vmul.f32 %v915, 0.044715
        %v919 = vmul.f32 %v916, 0.044715
        %v920 = vmul.f32 %v917, 0.044715
        %v921 = vadd.f32 %v899, %v918
        %v922 = vadd.f32 %v902, %v919
        %v923 = vadd.f32 %v907, %v920
        %v924 = vmul.f32 %v921, 0.7978846
        %v925 = vmul.f32 %v922, 0.7978846
        %v926 = vmul.f32 %v923, 0.7978846
        %v927 = vtanh.pop %v924
        %v928 = vtanh.pop %v925
        %v929 = vtanh.pop %v926
        %v930 = vadd.f32 %v927, 1.0
        %v931 = vadd.f32 %v928, 1.0
        %v932 = vadd.f32 %v929, 1.0
        %v933 = vmul.f32 %v930, 0.5
        %v934 = vmul.f32 %v931, 0.5
        %v935 = vmul.f32 %v932, 0.5
        %v936 = vmul.f32 %v899, %v933
        %v937 = vmul.f32 %v902, %v934
        %v938 = vmul.f32 %v907, %v935
        %v939 = vpack.c.bf16 %v937, %v936
        %v940 = vpack.c.bf16 %v938, %v938
        %v941 = vld [vmem:[%s5] sm:$0xf]
        %v942 = vld [vmem:[%s5 + $0x4] sm:$0xf]
        %v943 = vld [vmem:[%s5 + $0x8] sm:$0xf]
        %v944 = vld [vmem:[%s5 + $0xc] sm:$0xf]
        %v945 = vld [vmem:[%s5 + $0x10] sm:$0xf]
        %v946 = vld [vmem:[%s5 + $0x14] sm:$0xf]
        %v947 = vld [vmem:[%s5 + $0x18] sm:$0xf]
        %v948 = vld [vmem:[%s5 + $0x1c] sm:$0xf]
        %v949 = vlaneseq
        %v950 = vshrl.u32 %v949, 7
        %v951 = vsub.s32 4, %v950
        %v952 = vrot.slane %v459, %v951
        %v961 = vunpack.c.l.b16 %v941
        %v962 = vunpack.c.l.b16 %v942
        %v963 = vunpack.c.l.b16 %v943
        %v964 = vunpack.c.l.b16 %v944
        %v965 = vunpack.c.l.b16 %v945
        %v966 = vunpack.c.l.b16 %v946
        %v967 = vunpack.c.l.b16 %v947
        %v968 = vunpack.c.l.b16 %v948
        %v969 = vpack.c.b16 %v962, %v961
        %v970 = vpack.c.b16 %v964, %v963
        %v971 = vpack.c.b16 %v966, %v965
        %v972 = vpack.c.b16 %v968, %v967
        %v978 = vsel %vm404, %v939, 0
        %v981 = vsel %vm404, %v940, 0
        %983 = vmatprep.subr.bf16.mxu0 0
        %984 = vmatpush1.bf16.msra.mxu0 0
        %985 = vmatprep.subr.bf16.mxu0 0
        %986 = vmatpush1.bf16.msra.mxu0 0
        %987 = vmatprep.subr.bf16.mxu0 0
        %988 = vmatpush1.bf16.msra.mxu0 0
        %989 = vmatprep.subr.bf16.mxu0 0
        %990 = vmatpush1.bf16.msra.mxu0 0
        %991 = vmatprep.subr.bf16.mxu0 0
        %992 = vmatpush1.bf16.msra.mxu0 %v972
        %993 = vmatprep.subr.bf16.mxu0 0
        %994 = vmatpush1.bf16.msra.mxu0 %v971
        %995 = vmatprep.subr.bf16.mxu0 0
        %996 = vmatpush1.bf16.msra.mxu0 %v970
        %997 = vmatprep.subr.bf16.mxu0 0
        %998 = vmatpush1.bf16.msra.mxu0 %v969
        %999 = vmatprep.subr.bf16.mxu0 0
        %1000 = vmatpush2.bf16.msra.mxu0 0
        %1001 = vmatprep.subr.bf16.mxu0 0
        %1002 = vmatpush2.bf16.msra.mxu0 0
        %1003 = vmatprep.subr.bf16.mxu0 0
        %1004 = vmatpush2.bf16.msra.mxu0 0
        %1005 = vmatprep.subr.bf16.mxu0 0
        %1006 = vmatpush2.bf16.msra.mxu0 0
        %1007 = vmatprep.subr.bf16.mxu0 0
        %1008 = vmatpush2.bf16.msra.mxu0 0
        %1009 = vmatprep.subr.bf16.mxu0 0
        %1010 = vmatpush2.bf16.msra.mxu0 0
        %1011 = vmatprep.subr.bf16.mxu0 0
        %1012 = vmatpush2.bf16.msra.mxu0 0
        %1013 = vmatprep.subr.bf16.mxu0 0
        %1014 = vmatpush2.bf16.msra.mxu0 0
        %1015 = vmatprep.mubr.bf16.mxu0 0
        %1016 = vmatmul.mubr.bf16.gmra.mxu0 %v978
        %v1017 = vpop.f32.mrf.mxu0
        %v1018 = vadd.f32 %v952, %v1017
        %v1019 = vpop.f32.mrf.mxu0
        %v1020 = vpop.f32.mrf.mxu0
        %v1021 = vadd.f32 %v952, %v1020
        %v1022 = vpop.f32.mrf.mxu0
        %1023 = vmatprep.mubr.bf16.mxu0 0
        %1024 = vmatmul.mubr.bf16.gmra.mxu0 %v981
        %v1025 = vpop.f32.mrf.mxu0
        %v1026 = vadd.f32 %v952, %v1025
        %v1027 = vpop.f32.mrf.mxu0
        %v1028 = vpop.f32.mrf.mxu0
        %v1029 = vpop.f32.mrf.mxu0
        %1030 = vdwg.mxu0
        %v1031 = vadd.f32 %v778, %v1018
        %v1032 = vadd.f32 %v779, %v1021
        %v1033 = vadd.f32 %v780, %v1026
        %s1034 = scalar_lea.vmem %s6, 8
        %v1035 = vld [vmem:[%s1034] sm:$0x1f]
        %s1036 = scalar_lea.vmem %s7, 1
        %v1037 = vld [vmem:[%s1036] sm:$0x1]
        %s1038 = scalar_lea.vmem %s3, 16
        %v1039 = vld [vmem:[%s1038] sm:$0xf]
        %v1040 = vld [vmem:[%s1038 + $0x4] sm:$0xf]
        %v1041 = vld [vmem:[%s1038 + $0x8] sm:$0xf]
        %v1042 = vld [vmem:[%s1038 + $0xc] sm:$0xf]
        %v1043 = vsel %vm465, %v1031, 0.0
        %1044 = vadd.xlane.f32.xlu0 %v1043
        %v1045 = vpop.xlane.xlu0 %1044
        %v1046 = vsel %vm465, %v1032, 0.0
        %1047 = vadd.xlane.f32.xlu0 %v1046
        %v1048 = vpop.xlane.xlu0 %1047
        %v1049 = vsel %vm472, %v1033, 0.0
        %1050 = vadd.xlane.f32.xlu0 %v1049
        %v1051 = vpop.xlane.xlu0 %1050
        %v1052 = vmul.f32 %v1045, %v476
        %v1053 = vmul.f32 %v1048, %v476
        %v1054 = vmul.f32 %v1051, %v476
        %v1055 = vsub.f32 %v1031, %v1052
        %v1056 = vsub.f32 %v1032, %v1053
        %v1057 = vsub.f32 %v1033, %v1054
        %v1058 = vmul.f32 %v1055, %v1055
        %v1059 = vmul.f32 %v1056, %v1056
        %v1060 = vmul.f32 %v1057, %v1057
        %v1061 = vsel %vm465, %v1058, 0.0
        %1062 = vadd.xlane.f32.xlu0 %v1061
        %v1063 = vpop.xlane.xlu0 %1062
        %v1064 = vsel %vm465, %v1059, 0.0
        %1065 = vadd.xlane.f32.xlu0 %v1064
        %v1066 = vpop.xlane.xlu0 %1065
        %v1067 = vsel %vm472, %v1060, 0.0
        %1068 = vadd.xlane.f32.xlu0 %v1067
        %v1069 = vpop.xlane.xlu0 %1068
        %v1070 = vmul.f32 %v1063, %v476
        %v1071 = vmul.f32 %v1066, %v476
        %v1072 = vmul.f32 %v1069, %v476
        %v1073 = vadd.f32 %v1070, 1e-05
        %v1074 = vadd.f32 %v1071, 1e-05
        %v1075 = vadd.f32 %v1072, 1e-05
        %v1076 = vrsqrt.pop %v1073
        %v1077 = vrsqrt.pop %v1074
        %v1078 = vrsqrt.pop %v1075
        %v1079 = vmul.f32 %v1055, %v1076
        %v1080 = vmul.f32 %v1056, %v1077
        %v1081 = vmul.f32 %v1057, %v1078
        %v1082 = vlaneseq
        %v1083 = vshrl.u32 %v1082, 7
        %v1084 = vsub.s32 0, %v1083
        %v1085 = vrot.slane %v1035, %v1084
        %v1086 = vmul.f32 %v1079, %v1085
        %v1087 = vmul.f32 %v1080, %v1085
        %v1088 = vmul.f32 %v1081, %v1085
        %v1089 = vlaneseq
        %v1090 = vshrl.u32 %v1089, 7
        %v1091 = vsub.s32 1, %v1090
        %v1092 = vrot.slane %v1035, %v1091
        %v1093 = vadd.f32 %v1086, %v1092
        %v1094 = vadd.f32 %v1087, %v1092
        %v1095 = vadd.f32 %v1088, %v1092
        %v1096 = vmul.f32 %v1093, %v1093
        %v1097 = vmul.f32 %v1094, %v1094
        %v1098 = vmul.f32 %v1095, %v1095
        %v1099 = vadd.f32 %v1096, 0.0001
        %v1100 = vadd.f32 %v1097, 0.0001
        %v1101 = vadd.f32 %v1098, 0.0001
        %v1102 = vsel %vm465, %v1099, 0.0
        %v1103 = vsel %vm465, %v1100, 0.0
        %v1104 = vadd.f32 %v1102, %v1103
        %v1105 = vsel %vm472, %v1101, 0.0
        %v1106 = vadd.f32 %v1104, %v1105
        %v1107 = vrot.slane %v1106, 4
        %v1108 = vadd.f32 %v1106, %v1107
        %v1109 = vrot.slane %v1108, 2
        %v1110 = vadd.f32 %v1108, %v1109
        %v1111 = vrot.slane %v1110, 1
        %v1112 = vadd.f32 %v1110, %v1111
        %v1113 = vadd.f32 %v1112, 1e-08
        %v1114 = vrsqrt.pop %v1113
        %v1115 = vmul.f32 %v1093, %v1114
        %v1116 = vmul.f32 %v1094, %v1114
        %v1117 = vmul.f32 %v1095, %v1114
        %v1118 = vpack.c.bf16 %v1116, %v1115
        %v1119 = vpack.c.bf16 %v1117, %v1117
        %v1124 = vunpack.c.l.b16 %v1039
        %v1125 = vunpack.c.l.b16 %v1040
        %v1126 = vunpack.c.l.b16 %v1041
        %v1127 = vunpack.c.l.b16 %v1042
        %v1128 = vpack.c.b16 %v1125, %v1124
        %v1129 = vpack.c.b16 %v1127, %v1126
        %v1133 = vsel %vm465, %v1118, 0
        %v1136 = vsel %vm465, %v1119, 0
        %1138 = vmatprep.subr.bf16.mxu0 0
        %1139 = vmatpush1.bf16.msra.mxu0 0
        %1140 = vmatprep.subr.bf16.mxu0 0
        %1141 = vmatpush1.bf16.msra.mxu0 0
        %1142 = vmatprep.subr.bf16.mxu0 0
        %1143 = vmatpush1.bf16.msra.mxu0 0
        %1144 = vmatprep.subr.bf16.mxu0 0
        %1145 = vmatpush1.bf16.msra.mxu0 0
        %1146 = vmatprep.subr.bf16.mxu0 0
        %1147 = vmatpush1.bf16.msra.mxu0 0
        %1148 = vmatprep.subr.bf16.mxu0 0
        %1149 = vmatpush1.bf16.msra.mxu0 0
        %1150 = vmatprep.subr.bf16.mxu0 0
        %1151 = vmatpush1.bf16.msra.mxu0 %v1129
        %1152 = vmatprep.subr.bf16.mxu0 0
        %1153 = vmatpush1.bf16.msra.mxu0 %v1128
        %1154 = vmatprep.subr.bf16.mxu0 0
        %1155 = vmatpush2.bf16.msra.mxu0 0
        %1156 = vmatprep.subr.bf16.mxu0 0
        %1157 = vmatpush2.bf16.msra.mxu0 0
        %1158 = vmatprep.subr.bf16.mxu0 0
        %1159 = vmatpush2.bf16.msra.mxu0 0
        %1160 = vmatprep.subr.bf16.mxu0 0
        %1161 = vmatpush2.bf16.msra.mxu0 0
        %1162 = vmatprep.subr.bf16.mxu0 0
        %1163 = vmatpush2.bf16.msra.mxu0 0
        %1164 = vmatprep.subr.bf16.mxu0 0
        %1165 = vmatpush2.bf16.msra.mxu0 0
        %1166 = vmatprep.subr.bf16.mxu0 0
        %1167 = vmatpush2.bf16.msra.mxu0 0
        %1168 = vmatprep.subr.bf16.mxu0 0
        %1169 = vmatpush2.bf16.msra.mxu0 0
        %1170 = vmatprep.mubr.bf16.mxu0 0
        %1171 = vmatmul.mubr.bf16.gmra.mxu0 %v1133
        %v1172 = vpop.f32.mrf.mxu0
        %v1173 = vadd.f32 0.0, %v1172
        %v1174 = vpop.f32.mrf.mxu0
        %v1175 = vpop.f32.mrf.mxu0
        %v1176 = vadd.f32 0.0, %v1175
        %v1177 = vpop.f32.mrf.mxu0
        %1178 = vmatprep.mubr.bf16.mxu0 0
        %1179 = vmatmul.mubr.bf16.gmra.mxu0 %v1136
        %v1180 = vpop.f32.mrf.mxu0
        %v1181 = vadd.f32 0.0, %v1180
        %v1182 = vpop.f32.mrf.mxu0
        %v1183 = vpop.f32.mrf.mxu0
        %v1184 = vpop.f32.mrf.mxu0
        %1185 = vdwg.mxu0
        %v1186 = vand.u32 2147483647, %v1173
        %v1187 = vand.u32 2147483647, %v1176
        %v1188 = vand.u32 2147483647, %v1181
        %v1189 = vpack.c.bf16 %v1176, %v1173
        %v1190 = vpack.c.bf16 %v1181, %v1181
        %1193 = vrot.lane.b32.xlu0 %v1189, 96
        %v1194 = vpop.permute.xlu0 %1193
        %1195 = vrot.lane.b32.xlu0 %v1190, 96
        %v1196 = vpop.permute.xlu0 %1195
        %v1198 = vsel %vm465, %v1194, 0
        %v1201 = vsel %vm465, %v1196, 0
        %1203 = vmatprep.subr.bf16.mxu0 0
        %1204 = vmatpush1.bf16.xpose.msra.mxu0 0
        %1205 = vmatprep.subr.bf16.mxu0 0
        %1206 = vmatpush1.bf16.xpose.msra.mxu0 0
        %1207 = vmatprep.subr.bf16.mxu0 0
        %1208 = vmatpush1.bf16.xpose.msra.mxu0 0
        %1209 = vmatprep.subr.bf16.mxu0 0
        %1210 = vmatpush1.bf16.xpose.msra.mxu0 0
        %1211 = vmatprep.subr.bf16.mxu0 0
        %1212 = vmatpush1.bf16.xpose.msra.mxu0 0
        %1213 = vmatprep.subr.bf16.mxu0 0
        %1214 = vmatpush1.bf16.xpose.msra.mxu0 0
        %1215 = vmatprep.subr.bf16.mxu0 0
        %1216 = vmatpush1.bf16.xpose.msra.mxu0 %v1136
        %1217 = vmatprep.subr.bf16.mxu0 0
        %1218 = vmatpush1.bf16.xpose.msra.mxu0 %v1133
        %1219 = vmatprep.subr.bf16.mxu0 0
        %1220 = vmatpush2.bf16.xpose.msra.mxu0 0
        %1221 = vmatprep.subr.bf16.mxu0 0
        %1222 = vmatpush2.bf16.xpose.msra.mxu0 0
        %1223 = vmatprep.subr.bf16.mxu0 0
        %1224 = vmatpush2.bf16.xpose.msra.mxu0 0
        %1225 = vmatprep.subr.bf16.mxu0 0
        %1226 = vmatpush2.bf16.xpose.msra.mxu0 0
        %1227 = vmatprep.subr.bf16.mxu0 0
        %1228 = vmatpush2.bf16.xpose.msra.mxu0 0
        %1229 = vmatprep.subr.bf16.mxu0 0
        %1230 = vmatpush2.bf16.xpose.msra.mxu0 0
        %1231 = vmatprep.subr.bf16.mxu0 0
        %1232 = vmatpush2.bf16.xpose.msra.mxu0 0
        %1233 = vmatprep.subr.bf16.mxu0 0
        %1234 = vmatpush2.bf16.xpose.msra.mxu0 0
        %1235 = vmatprep.mubr.bf16.mxu0 0
        %1236 = vmatmul.mubr.bf16.gmra.mxu0 %v1198
        %v1237 = vpop.f32.mrf.mxu0
        %v1238 = vadd.f32 0.0, %v1237
        %v1239 = vpop.f32.mrf.mxu0
        %v1240 = vpop.f32.mrf.mxu0
        %v1241 = vadd.f32 0.0, %v1240
        %v1242 = vpop.f32.mrf.mxu0
        %1243 = vmatprep.mubr.bf16.mxu0 0
        %1244 = vmatmul.mubr.bf16.gmra.mxu0 %v1201
        %v1245 = vpop.f32.mrf.mxu0
        %v1246 = vadd.f32 0.0, %v1245
        %v1247 = vpop.f32.mrf.mxu0
        %v1248 = vpop.f32.mrf.mxu0
        %v1249 = vpop.f32.mrf.mxu0
        %1250 = vdwg.mxu0
        %v1251 = vand.u32 2147483647, %v1238
        %v1252 = vand.u32 2147483647, %v1241
        %v1253 = vand.u32 2147483647, %v1246
        %v1254 = vsel %vm679, %v1251, -inf
        %1255 = vmax.xlane.f32.xlu0 %v1254
        %v1256 = vpop.xlane.xlu0 %1255
        %v1257 = vsel %vm679, %v1252, -inf
        %1258 = vmax.xlane.f32.xlu0 %v1257
        %v1259 = vpop.xlane.xlu0 %1258
        %v1260 = vsel %vm686, %v1253, -inf
        %1261 = vmax.xlane.f32.xlu0 %v1260
        %v1262 = vpop.xlane.xlu0 %1261
        %v1263 = vsub.f32 %v1251, %v1256
        %v1264 = vsub.f32 %v1252, %v1259
        %v1265 = vsub.f32 %v1253, %v1262
        %v1266 = vmul.f32 %v1263, 1.442695
        %v1267 = vpow.pop %v1266
        %v1268 = vmul.f32 %v1264, 1.442695
        %v1269 = vpow.pop %v1268
        %v1270 = vmul.f32 %v1265, 1.442695
        %v1271 = vpow.pop %v1270
        %v1272 = vsel %vm679, %v1267, 0.0
        %1273 = vadd.xlane.f32.xlu0 %v1272
        %v1274 = vpop.xlane.xlu0 %1273
        %v1275 = vsel %vm679, %v1269, 0.0
        %1276 = vadd.xlane.f32.xlu0 %v1275
        %v1277 = vpop.xlane.xlu0 %1276
        %v1278 = vsel %vm686, %v1271, 0.0
        %1279 = vadd.xlane.f32.xlu0 %v1278
        %v1280 = vpop.xlane.xlu0 %1279
        %v1281 = vrcp.pop %v1274
        %v1282 = vrcp.pop %v1277
        %v1283 = vrcp.pop %v1280
        %v1284 = vmul.f32 %v1267, %v1281
        %v1285 = vmul.f32 %v1269, %v1282
        %v1286 = vmul.f32 %v1271, %v1283
        %v1287 = vpack.c.bf16 %v1285, %v1284
        %v1288 = vpack.c.bf16 %v1286, %v1286
        %v1289 = vpack.c.bf16 %v1187, %v1186
        %v1290 = vpack.c.bf16 %v1188, %v1188
        %v1292 = vsel %vm679, %v1287, 0
        %v1295 = vsel %vm679, %v1288, 0
        %v1298 = vand.u32 %v1290, %v726
        %1300 = vmatprep.subr.bf16.mxu0 0
        %1301 = vmatpush1.bf16.msra.mxu0 0
        %1302 = vmatprep.subr.bf16.mxu0 0
        %1303 = vmatpush1.bf16.msra.mxu0 0
        %1304 = vmatprep.subr.bf16.mxu0 0
        %1305 = vmatpush1.bf16.msra.mxu0 0
        %1306 = vmatprep.subr.bf16.mxu0 0
        %1307 = vmatpush1.bf16.msra.mxu0 0
        %1308 = vmatprep.subr.bf16.mxu0 0
        %1309 = vmatpush1.bf16.msra.mxu0 0
        %1310 = vmatprep.subr.bf16.mxu0 0
        %1311 = vmatpush1.bf16.msra.mxu0 0
        %1312 = vmatprep.subr.bf16.mxu0 0
        %1313 = vmatpush1.bf16.msra.mxu0 %v1298
        %1314 = vmatprep.subr.bf16.mxu0 0
        %1315 = vmatpush1.bf16.msra.mxu0 %v1289
        %1316 = vmatprep.subr.bf16.mxu0 0
        %1317 = vmatpush2.bf16.msra.mxu0 0
        %1318 = vmatprep.subr.bf16.mxu0 0
        %1319 = vmatpush2.bf16.msra.mxu0 0
        %1320 = vmatprep.subr.bf16.mxu0 0
        %1321 = vmatpush2.bf16.msra.mxu0 0
        %1322 = vmatprep.subr.bf16.mxu0 0
        %1323 = vmatpush2.bf16.msra.mxu0 0
        %1324 = vmatprep.subr.bf16.mxu0 0
        %1325 = vmatpush2.bf16.msra.mxu0 0
        %1326 = vmatprep.subr.bf16.mxu0 0
        %1327 = vmatpush2.bf16.msra.mxu0 0
        %1328 = vmatprep.subr.bf16.mxu0 0
        %1329 = vmatpush2.bf16.msra.mxu0 0
        %1330 = vmatprep.subr.bf16.mxu0 0
        %1331 = vmatpush2.bf16.msra.mxu0 0
        %1332 = vmatprep.mubr.bf16.mxu0 0
        %1333 = vmatmul.mubr.bf16.gmra.mxu0 %v1292
        %v1334 = vpop.f32.mrf.mxu0
        %v1335 = vadd.f32 0.0, %v1334
        %v1336 = vpop.f32.mrf.mxu0
        %v1337 = vpop.f32.mrf.mxu0
        %v1338 = vadd.f32 0.0, %v1337
        %v1339 = vpop.f32.mrf.mxu0
        %1340 = vmatprep.mubr.bf16.mxu0 0
        %1341 = vmatmul.mubr.bf16.gmra.mxu0 %v1295
        %v1342 = vpop.f32.mrf.mxu0
        %v1343 = vadd.f32 0.0, %v1342
        %v1344 = vpop.f32.mrf.mxu0
        %v1345 = vpop.f32.mrf.mxu0
        %v1346 = vpop.f32.mrf.mxu0
        %1347 = vdwg.mxu0
        %v1348 = vadd.f32 %v1031, %v1335
        %v1349 = vadd.f32 %v1032, %v1338
        %v1350 = vadd.f32 %v1033, %v1343
        %v1351 = vsel %vm465, %v1348, 0.0
        %1352 = vadd.xlane.f32.xlu0 %v1351
        %v1353 = vpop.xlane.xlu0 %1352
        %v1354 = vsel %vm465, %v1349, 0.0
        %1355 = vadd.xlane.f32.xlu0 %v1354
        %v1356 = vpop.xlane.xlu0 %1355
        %v1357 = vsel %vm472, %v1350, 0.0
        %1358 = vadd.xlane.f32.xlu0 %v1357
        %v1359 = vpop.xlane.xlu0 %1358
        %v1360 = vmul.f32 %v1353, %v476
        %v1361 = vmul.f32 %v1356, %v476
        %v1362 = vmul.f32 %v1359, %v476
        %v1363 = vsub.f32 %v1348, %v1360
        %v1364 = vsub.f32 %v1349, %v1361
        %v1365 = vsub.f32 %v1350, %v1362
        %v1366 = vmul.f32 %v1363, %v1363
        %v1367 = vmul.f32 %v1364, %v1364
        %v1368 = vmul.f32 %v1365, %v1365
        %v1369 = vsel %vm465, %v1366, 0.0
        %1370 = vadd.xlane.f32.xlu0 %v1369
        %v1371 = vpop.xlane.xlu0 %1370
        %v1372 = vsel %vm465, %v1367, 0.0
        %1373 = vadd.xlane.f32.xlu0 %v1372
        %v1374 = vpop.xlane.xlu0 %1373
        %v1375 = vsel %vm472, %v1368, 0.0
        %1376 = vadd.xlane.f32.xlu0 %v1375
        %v1377 = vpop.xlane.xlu0 %1376
        %v1378 = vmul.f32 %v1371, %v476
        %v1379 = vmul.f32 %v1374, %v476
        %v1380 = vmul.f32 %v1377, %v476
        %v1381 = vadd.f32 %v1378, 1e-05
        %v1382 = vadd.f32 %v1379, 1e-05
        %v1383 = vadd.f32 %v1380, 1e-05
        %v1384 = vrsqrt.pop %v1381
        %v1385 = vrsqrt.pop %v1382
        %v1386 = vrsqrt.pop %v1383
        %v1387 = vmul.f32 %v1363, %v1384
        %v1388 = vmul.f32 %v1364, %v1385
        %v1389 = vmul.f32 %v1365, %v1386
        %v1390 = vlaneseq
        %v1391 = vshrl.u32 %v1390, 7
        %v1392 = vsub.s32 2, %v1391
        %v1393 = vrot.slane %v1035, %v1392
        %v1394 = vmul.f32 %v1387, %v1393
        %v1395 = vmul.f32 %v1388, %v1393
        %v1396 = vmul.f32 %v1389, %v1393
        %v1397 = vlaneseq
        %v1398 = vshrl.u32 %v1397, 7
        %v1399 = vsub.s32 3, %v1398
        %v1400 = vrot.slane %v1035, %v1399
        %v1401 = vadd.f32 %v1394, %v1400
        %v1402 = vadd.f32 %v1395, %v1400
        %v1403 = vadd.f32 %v1396, %v1400
        %v1404 = vpack.c.bf16 %v1402, %v1401
        %v1405 = vpack.c.bf16 %v1403, %v1403
        %s1406 = scalar_lea.vmem %s4, 16
        %v1407 = vld [vmem:[%s1406] sm:$0xf]
        %v1408 = vld [vmem:[%s1406 + $0x4] sm:$0xf]
        %v1409 = vld [vmem:[%s1406 + $0x8] sm:$0xf]
        %v1410 = vld [vmem:[%s1406 + $0xc] sm:$0xf]
        %v1412 = vlaneseq
        %v1413 = vshrl.u32 %v1412, 7
        %v1414 = vsub.s32 0, %v1413
        %v1415 = vrot.slane %v1037, %v1414
        %v1421 = vunpack.c.l.b16 %v1407
        %v1422 = vunpack.c.l.b16 %v1408
        %v1423 = vunpack.c.l.b16 %v1409
        %v1424 = vunpack.c.l.b16 %v1410
        %v1425 = vpack.c.b16 %v1422, %v1421
        %v1426 = vpack.c.b16 %v1424, %v1423
        %v1430 = vsel %vm465, %v1404, 0
        %v1433 = vsel %vm465, %v1405, 0
        %1435 = vmatprep.subr.bf16.mxu0 0
        %1436 = vmatpush1.bf16.msra.mxu0 0
        %1437 = vmatprep.subr.bf16.mxu0 0
        %1438 = vmatpush1.bf16.msra.mxu0 0
        %1439 = vmatprep.subr.bf16.mxu0 0
        %1440 = vmatpush1.bf16.msra.mxu0 0
        %1441 = vmatprep.subr.bf16.mxu0 0
        %1442 = vmatpush1.bf16.msra.mxu0 0
        %1443 = vmatprep.subr.bf16.mxu0 0
        %1444 = vmatpush1.bf16.msra.mxu0 0
        %1445 = vmatprep.subr.bf16.mxu0 0
        %1446 = vmatpush1.bf16.msra.mxu0 0
        %1447 = vmatprep.subr.bf16.mxu0 0
        %1448 = vmatpush1.bf16.msra.mxu0 %v1426
        %1449 = vmatprep.subr.bf16.mxu0 0
        %1450 = vmatpush1.bf16.msra.mxu0 %v1425
        %1451 = vmatprep.subr.bf16.mxu0 0
        %1452 = vmatpush2.bf16.msra.mxu0 0
        %1453 = vmatprep.subr.bf16.mxu0 0
        %1454 = vmatpush2.bf16.msra.mxu0 0
        %1455 = vmatprep.subr.bf16.mxu0 0
        %1456 = vmatpush2.bf16.msra.mxu0 0
        %1457 = vmatprep.subr.bf16.mxu0 0
        %1458 = vmatpush2.bf16.msra.mxu0 0
        %1459 = vmatprep.subr.bf16.mxu0 0
        %1460 = vmatpush2.bf16.msra.mxu0 0
        %1461 = vmatprep.subr.bf16.mxu0 0
        %1462 = vmatpush2.bf16.msra.mxu0 0
        %1463 = vmatprep.subr.bf16.mxu0 0
        %1464 = vmatpush2.bf16.msra.mxu0 0
        %1465 = vmatprep.subr.bf16.mxu0 0
        %1466 = vmatpush2.bf16.msra.mxu0 0
        %1467 = vmatprep.mubr.bf16.mxu0 0
        %1468 = vmatmul.mubr.bf16.gmra.mxu0 %v1430
        %v1469 = vpop.f32.mrf.mxu0
        %v1470 = vadd.f32 %v1415, %v1469
        %v1471 = vpop.f32.mrf.mxu0
        %v1472 = vpop.f32.mrf.mxu0
        %v1473 = vadd.f32 %v1415, %v1472
        %v1474 = vpop.f32.mrf.mxu0
        %1475 = vmatprep.mubr.bf16.mxu0 0
        %1476 = vmatmul.mubr.bf16.gmra.mxu0 %v1433
        %v1477 = vpop.f32.mrf.mxu0
        %v1478 = vadd.f32 %v1415, %v1477
        %v1479 = vpop.f32.mrf.mxu0
        %v1480 = vpop.f32.mrf.mxu0
        %v1481 = vpop.f32.mrf.mxu0
        %1482 = vdwg.mxu0
        %v1483 = vmul.f32 %v1470, %v1470
        %v1484 = vmul.f32 %v1473, %v1473
        %v1485 = vmul.f32 %v1478, %v1478
        %v1486 = vmul.f32 %v1470, %v1483
        %v1487 = vmul.f32 %v1473, %v1484
        %v1488 = vmul.f32 %v1478, %v1485
        %v1489 = vmul.f32 %v1486, 0.044715
        %v1490 = vmul.f32 %v1487, 0.044715
        %v1491 = vmul.f32 %v1488, 0.044715
        %v1492 = vadd.f32 %v1470, %v1489
        %v1493 = vadd.f32 %v1473, %v1490
        %v1494 = vadd.f32 %v1478, %v1491
        %v1495 = vmul.f32 %v1492, 0.7978846
        %v1496 = vmul.f32 %v1493, 0.7978846
        %v1497 = vmul.f32 %v1494, 0.7978846
        %v1498 = vtanh.pop %v1495
        %v1499 = vtanh.pop %v1496
        %v1500 = vtanh.pop %v1497
        %v1501 = vadd.f32 %v1498, 1.0
        %v1502 = vadd.f32 %v1499, 1.0
        %v1503 = vadd.f32 %v1500, 1.0
        %v1504 = vmul.f32 %v1501, 0.5
        %v1505 = vmul.f32 %v1502, 0.5
        %v1506 = vmul.f32 %v1503, 0.5
        %v1507 = vmul.f32 %v1470, %v1504
        %v1508 = vmul.f32 %v1473, %v1505
        %v1509 = vmul.f32 %v1478, %v1506
        %v1510 = vpack.c.bf16 %v1508, %v1507
        %v1511 = vpack.c.bf16 %v1509, %v1509
        %s1512 = scalar_lea.vmem %s5, 32
        %v1513 = vld [vmem:[%s1512] sm:$0xf]
        %v1514 = vld [vmem:[%s1512 + $0x4] sm:$0xf]
        %v1515 = vld [vmem:[%s1512 + $0x8] sm:$0xf]
        %v1516 = vld [vmem:[%s1512 + $0xc] sm:$0xf]
        %v1517 = vld [vmem:[%s1512 + $0x10] sm:$0xf]
        %v1518 = vld [vmem:[%s1512 + $0x14] sm:$0xf]
        %v1519 = vld [vmem:[%s1512 + $0x18] sm:$0xf]
        %v1520 = vld [vmem:[%s1512 + $0x1c] sm:$0xf]
        %v1521 = vlaneseq
        %v1522 = vshrl.u32 %v1521, 7
        %v1523 = vsub.s32 4, %v1522
        %v1524 = vrot.slane %v1035, %v1523
        %v1533 = vunpack.c.l.b16 %v1513
        %v1534 = vunpack.c.l.b16 %v1514
        %v1535 = vunpack.c.l.b16 %v1515
        %v1536 = vunpack.c.l.b16 %v1516
        %v1537 = vunpack.c.l.b16 %v1517
        %v1538 = vunpack.c.l.b16 %v1518
        %v1539 = vunpack.c.l.b16 %v1519
        %v1540 = vunpack.c.l.b16 %v1520
        %v1541 = vpack.c.b16 %v1534, %v1533
        %v1542 = vpack.c.b16 %v1536, %v1535
        %v1543 = vpack.c.b16 %v1538, %v1537
        %v1544 = vpack.c.b16 %v1540, %v1539
        %v1550 = vsel %vm404, %v1510, 0
        %v1553 = vsel %vm404, %v1511, 0
        %1555 = vmatprep.subr.bf16.mxu0 0
        %1556 = vmatpush1.bf16.msra.mxu0 0
        %1557 = vmatprep.subr.bf16.mxu0 0
        %1558 = vmatpush1.bf16.msra.mxu0 0
        %1559 = vmatprep.subr.bf16.mxu0 0
        %1560 = vmatpush1.bf16.msra.mxu0 0
        %1561 = vmatprep.subr.bf16.mxu0 0
        %1562 = vmatpush1.bf16.msra.mxu0 0
        %1563 = vmatprep.subr.bf16.mxu0 0
        %1564 = vmatpush1.bf16.msra.mxu0 %v1544
        %1565 = vmatprep.subr.bf16.mxu0 0
        %1566 = vmatpush1.bf16.msra.mxu0 %v1543
        %1567 = vmatprep.subr.bf16.mxu0 0
        %1568 = vmatpush1.bf16.msra.mxu0 %v1542
        %1569 = vmatprep.subr.bf16.mxu0 0
        %1570 = vmatpush1.bf16.msra.mxu0 %v1541
        %1571 = vmatprep.subr.bf16.mxu0 0
        %1572 = vmatpush2.bf16.msra.mxu0 0
        %1573 = vmatprep.subr.bf16.mxu0 0
        %1574 = vmatpush2.bf16.msra.mxu0 0
        %1575 = vmatprep.subr.bf16.mxu0 0
        %1576 = vmatpush2.bf16.msra.mxu0 0
        %1577 = vmatprep.subr.bf16.mxu0 0
        %1578 = vmatpush2.bf16.msra.mxu0 0
        %1579 = vmatprep.subr.bf16.mxu0 0
        %1580 = vmatpush2.bf16.msra.mxu0 0
        %1581 = vmatprep.subr.bf16.mxu0 0
        %1582 = vmatpush2.bf16.msra.mxu0 0
        %1583 = vmatprep.subr.bf16.mxu0 0
        %1584 = vmatpush2.bf16.msra.mxu0 0
        %1585 = vmatprep.subr.bf16.mxu0 0
        %1586 = vmatpush2.bf16.msra.mxu0 0
        %1587 = vmatprep.mubr.bf16.mxu0 0
        %1588 = vmatmul.mubr.bf16.gmra.mxu0 %v1550
        %v1589 = vpop.f32.mrf.mxu0
        %v1590 = vadd.f32 %v1524, %v1589
        %v1591 = vpop.f32.mrf.mxu0
        %v1592 = vpop.f32.mrf.mxu0
        %v1593 = vpop.f32.mrf.mxu0
        %1594 = vmatprep.mubr.bf16.mxu0 0
        %1595 = vmatmul.mubr.bf16.gmra.mxu0 %v1553
        %v1596 = vpop.f32.mrf.mxu0
        %v1597 = vpop.f32.mrf.mxu0
        %v1598 = vpop.f32.mrf.mxu0
        %v1599 = vpop.f32.mrf.mxu0
        %1600 = vdwg.mxu0
        %v1601 = vadd.f32 %v1348, %v1590
        %v1602 = vld [vmem:[%s9] sm:$0x7]
        %v1603 = vsel %vm472, %v1601, 0.0
        %1604 = vadd.xlane.f32.xlu0 %v1603
        %v1605 = vpop.xlane.xlu0 %1604
        %v1606 = vmul.f32 %v1605, %v476
        %v1607 = vsub.f32 %v1601, %v1606
        %v1608 = vmul.f32 %v1607, %v1607
        %v1609 = vsel %vm472, %v1608, 0.0
        %1610 = vadd.xlane.f32.xlu0 %v1609
        %v1611 = vpop.xlane.xlu0 %1610
        %v1612 = vmul.f32 %v1611, %v476
        %v1613 = vadd.f32 %v1612, 1e-05
        %v1614 = vrsqrt.pop %v1613
        %v1615 = vmul.f32 %v1607, %v1614
        %v1616 = vmul.f32 %v1615, %v1602
        %v1618 = vrot.slane %v1602, 1
        %v1620 = vadd.f32 %v1616, %v1618
        %v1621 = vpack.c.bf16 %v1620, %v1620
        %v1622 = vld [vmem:[%s8] sm:$0xf]
        %v1623 = vld [vmem:[%s8 + $0x4] sm:$0xf]
        %v1624 = vld [vmem:[%s8 + $0x8] sm:$0xf]
        %v1625 = vld [vmem:[%s8 + $0xc] sm:$0xf]
        %v1630 = vunpack.c.l.b16 %v1622
        %v1631 = vunpack.c.l.b16 %v1623
        %v1632 = vunpack.c.l.b16 %v1624
        %v1633 = vunpack.c.l.b16 %v1625
        %v1634 = vpack.c.b16 %v1631, %v1630
        %v1635 = vpack.c.b16 %v1633, %v1632
        %v1638 = vrot.slane %v1602, 2
        %v1641 = vsel %vm465, %v1621, 0
        %1643 = vmatprep.subr.bf16.mxu0 0
        %1644 = vmatpush1.bf16.msra.mxu0 0
        %1645 = vmatprep.subr.bf16.mxu0 0
        %1646 = vmatpush1.bf16.msra.mxu0 0
        %1647 = vmatprep.subr.bf16.mxu0 0
        %1648 = vmatpush1.bf16.msra.mxu0 0
        %1649 = vmatprep.subr.bf16.mxu0 0
        %1650 = vmatpush1.bf16.msra.mxu0 0
        %1651 = vmatprep.subr.bf16.mxu0 0
        %1652 = vmatpush1.bf16.msra.mxu0 0
        %1653 = vmatprep.subr.bf16.mxu0 0
        %1654 = vmatpush1.bf16.msra.mxu0 0
        %1655 = vmatprep.subr.bf16.mxu0 0
        %1656 = vmatpush1.bf16.msra.mxu0 %v1635
        %1657 = vmatprep.subr.bf16.mxu0 0
        %1658 = vmatpush1.bf16.msra.mxu0 %v1634
        %1659 = vmatprep.subr.bf16.mxu0 0
        %1660 = vmatpush2.bf16.msra.mxu0 0
        %1661 = vmatprep.subr.bf16.mxu0 0
        %1662 = vmatpush2.bf16.msra.mxu0 0
        %1663 = vmatprep.subr.bf16.mxu0 0
        %1664 = vmatpush2.bf16.msra.mxu0 0
        %1665 = vmatprep.subr.bf16.mxu0 0
        %1666 = vmatpush2.bf16.msra.mxu0 0
        %1667 = vmatprep.subr.bf16.mxu0 0
        %1668 = vmatpush2.bf16.msra.mxu0 0
        %1669 = vmatprep.subr.bf16.mxu0 0
        %1670 = vmatpush2.bf16.msra.mxu0 0
        %1671 = vmatprep.subr.bf16.mxu0 0
        %1672 = vmatpush2.bf16.msra.mxu0 0
        %1673 = vmatprep.subr.bf16.mxu0 0
        %1674 = vmatpush2.bf16.msra.mxu0 0
        %1675 = vmatprep.mubr.bf16.mxu0 0
        %1676 = vmatmul.mubr.bf16.gmra.mxu0 %v1641
        %v1677 = vpop.f32.mrf.mxu0
        %v1678 = vadd.f32 %v1638, %v1677
        %v1679 = vpop.f32.mrf.mxu0
        %v1680 = vpop.f32.mrf.mxu0
        %v1681 = vpop.f32.mrf.mxu0
        %1682 = vdwg.mxu0
        %1683 = vst [vmem:[%s351] sm:$0x1] %v1678
        %s1684 = sand.u32 %s247, 1
        %s1685 = scalar_lea.sflag [#allocation3], %s1684
        %s1686 = sand.u32 %s247, 1
        %s1687 = scalar_lea.vmem [#allocation2], %s1686
        // Predicated region
        $region61: #{quantum_vit_forward.1} parent=59 // pred_check
          %p1688 = pneg %p257
        $region62: #{quantum_vit_forward.1} parent=59 // pred_check_branch
          %1690 = sbr.rel (%p1688) target = $region64
        $region63: #{quantum_vit_forward.1} parent=59 // pred_region
          %s1692 = ssub.s32 16, 16
          %1693 = vsyncadd %s1685, %s1692
          %s1694 = smul.addr %s24, 16
          %s1695 = scalar_lea.hbm %s10, %s1694
          %s1697 = sshll.u32 %s1687, 4
          %s1698 = int_to_ptr.vmem [resolvable:$true] %s1697
          %1700 = dma.vmem_to_hbm [thread:$0]  %s1698, 16, %s1695, %s1685
        $region64: #{quantum_vit_forward.1} parent=59 // pred_fallthru
          _
      $region60: #{quantum_vit_forward.1} parent=5 // pred_fallthru
        _
      %p1701 = scmp.le.s32.totalorder 2, %s19
      // Predicated region
      $region65: #{quantum_vit_forward.1} parent=5 // pred_check
        %p1702 = pneg %p1701
      $region66: #{quantum_vit_forward.1} parent=5 // pred_check_branch
        %1704 = sbr.rel (%p1702) target = $region68
      $region67: #{quantum_vit_forward.1} parent=5 // pred_region
        %s1705 = ssub.s32 %s19, 2
        // Predicated region
        $region69: #{quantum_vit_forward.1} parent=67 // pred_check
          %p1706 = pneg %p263
        $region70: #{quantum_vit_forward.1} parent=67 // pred_check_branch
          %1708 = sbr.rel (%p1706) target = $region72
        $region71: #{quantum_vit_forward.1} parent=67 // pred_region
          %s1709 = sand.u32 %s248, 1
          %s1710 = scalar_lea.sflag [#allocation3], %s1709
          %s1711 = sand.u32 %s248, 1
          %s1712 = scalar_lea.vmem [#allocation2], %s1711
          %1713 = dma.done %s1710, 16
        $region72: #{quantum_vit_forward.1} parent=67 // pred_fallthru
          _
      $region68: #{quantum_vit_forward.1} parent=5 // pred_fallthru
        _
    $region6: #{quantum_vit_forward.1} parent=1 // loop_footer
      %s23 = sadd.s32 1, %s19
    $region7: #{quantum_vit_forward.1} parent=1 // loop_footer_branch
      %18 = sbr.rel target = $region3
    $region8: #{quantum_vit_forward.1} parent=1 // loop_exit
      _
    %1714 = vsyncpa [#allocation3], 1
    %s1715 = scalar_lea.sflag [#allocation3], 1
    %1716 = vsyncpa %s1715, 1

</llo_original>
